<compile_context>
chip_gen: v7x
topology: tpu7x:2x2x1
jax: 0.10.0
libtpu: 0.0.40
codegen_flags: <defaults>
</compile_context>

<pallas_src>
import functools

import jax
import jax.numpy as jnp
from jax import lax
from jax.experimental import pallas as pl
from jax.experimental.pallas import tpu as pltpu

LANE = 128


def _round_up(x, m):
    return ((x + m - 1) // m) * m


def _conv_kernel(x_ref, w_ref, st_ref, o_ref, *, KH, KW, stride, TH, WO, last_relu):
    """One (batch, cout-tile, row-tile) grid step.

    x_ref : (1, Hp, Wp, Cin_pad)  bf16 zero-padded activation quant codes (VMEM-resident)
    w_ref : (KH*KW*Cin_pad, TCO)  bf16 per-channel weight quant codes, Cout lane-padded
    st_ref: (2, TCO)              f32 folded (scale, shift): quant scales + bias + BN
    o_ref : (1, TH, WO, TCO)      output row tile (lane-dense Cout)
    """
    Cin = x_ref.shape[3]
    K, TCO = w_ref.shape

    r = pl.program_id(2)
    rows_in = (TH - 1) * stride + KH                    # input rows feeding this row tile
    row0 = pl.multiple_of(r * (TH * stride), TH * stride)

    # Halo slice of the VMEM-resident padded image: (1, rows_in, Wp, Cin_pad).
    xt = x_ref[:, pl.ds(row0, rows_in), :, :]

    # im2col once per row tile -> ONE MXU contraction of depth K = KH*KW*Cin_pad.
    # Cin_pad is a lane multiple for non-tiny Cin, so each tap lands lane-aligned and
    # the concat lowers to plain vreg copies.
    # TODO(synk): for stride>1 the strided slice on W goes through sublane gathers;
    # pre-split even/odd columns in the wrapper if a strided variant is ever needed
    # (NIN is stride-1 everywhere).
    cols = []
    for kh in range(KH):
        for kw in range(KW):
            cols.append(
                lax.slice(
                    xt,
                    (0, kh, kw, 0),
                    (1, kh + (TH - 1) * stride + 1, kw + (WO - 1) * stride + 1, Cin),
                    (1, stride, stride, 1),
                ))                                      # (1, TH, WO, Cin_pad)
    col = jnp.concatenate(cols, axis=-1).reshape(TH * WO, K)

    # Quant codes are exact integers in bf16 (|code| <= 255); products and the f32
    # accumulation are exact, so this matches the fp32 fake-quant conv up to the
    # epilogue rounding.
    acc = jnp.dot(col, w_ref[...], preferred_element_type=jnp.float32)   # (TH*WO, TCO)
    y = acc.reshape(1, TH, WO, TCO)

    # Fused epilogue: y*s + t with s = gamma/(sqrt(var+eps)*a_scale*w_scale_c),
    # t = beta + (bias - mean)*gamma/sqrt(var+eps); optional trailing ReLU.
    stv = st_ref[...]
    y = y * stv[0][None, None, None, :] + stv[1][None, None, None, :]
    if last_relu:
        y = jnp.maximum(y, 0.0)

    o_ref[...] = y.astype(o_ref.dtype)


def _pick_row_tile(HO, WO, K):
    """Row tile targeting >= ~1024 output pixels per grid step (amortizes the ~0.35us
    per-step overhead), capped so the im2col buffer stays around <= 8 MiB of bf16."""
    target_pixels = max(256, min(1024, (8 * 1024 * 1024) // max(2 * K, 1)))
    th = max(1, (target_pixels + WO - 1) // WO)
    return min(HO, th)


def quan_conv2d(x_nchw, weight_oihw, bias, gamma, beta, running_mean, running_var, *,
                stride=1, padding=1, first_layer=0, last_relu=0,
                abits=8, wbits=8, eps=1e-5,
                out_dtype=jnp.float32, channels_last=False):
    """QuanConv2d forward. NCHW/OIHW (PyTorch) in; NCHW out (NHWC when channels_last).
    groups=1, bn_fold=0, q_type=1 (asymmetric)."""
    N, Cin, H, W = x_nchw.shape
    Cout, _, KH, KW = weight_oihw.shape
    HO = (H + 2 * padding - KH) // stride + 1
    WO = (W + 2 * padding - KW) // stride + 1
    Wp = W + 2 * padding

    # ---- activation path: ReLU + layer-level asymmetric fake-quant (hoisted) ----
    # The kernel consumes integer codes x_codes = a_scale * dequant(x) (exact in bf16);
    # 1/a_scale is folded into the epilogue, so values suffer no bf16 rounding.
    # TODO(synk): keep activations NHWC (padded Cout) end-to-end across layers to avoid
    # per-layer NCHW<->NHWC transposes (use channels_last=True / out_dtype=bfloat16).
    x = jnp.transpose(x_nchw, (0, 2, 3, 1)).astype(jnp.float32)          # NHWC
    if not first_layer:
        x = jnp.maximum(x, 0.0)
        a_levels = float((1 << abits) - 1)
        a_min = jnp.min(x)
        a_max = jnp.max(x)
        a_rng = jnp.maximum(a_max - a_min, 1e-12)          # guard constant input
        a_scale = a_levels / a_rng
        a_zp = jnp.round(a_min * a_scale)
        xq = jnp.clip(jnp.round(x * a_scale - a_zp), 0.0, a_levels)
        x_codes = xq + a_zp            # == a_scale * dequant(x); integers (typ. 0..255)
    else:
        a_scale = 1.0
        x_codes = x                    # TODO(synk): first layer feeds raw f32 -> bf16 MXU
                                       # (~2^-9 rounding); PyTorch runs fp32 conv here.

    # ---- channel padding for lane alignment ----
    if Cin % LANE == 0:
        Cin_pad = Cin
    elif Cin >= LANE // 2:
        Cin_pad = _round_up(Cin, LANE)     # every im2col tap becomes lane-aligned
    else:
        Cin_pad = Cin                      # tiny Cin: padding would blow up MXU depth
    K = KH * KW * Cin_pad

    Cout_pad = _round_up(Cout, LANE)
    if Cout_pad <= 512:
        TCO = Cout_pad                     # whole Cout per step -> im2col built once
    else:
        TCO = 256
        Cout_pad = _round_up(Cout_pad, TCO)
    n_co = Cout_pad // TCO

    # ---- row tiling (ragged HO handled by padding output rows) ----
    TH = _pick_row_tile(HO, WO, K)
    n_rows = (HO + TH - 1) // TH
    HO_pad = n_rows * TH
    Hp_need = (HO_pad - 1) * stride + KH             # input rows the last tile touches

    # Zero-pad spatially (+ extra bottom rows for the ragged tile, + Cin lanes) in HBM so
    # the kernel DMAs dense tiles directly.  Code 0 == dequantized 0, so zero padding is
    # exact for the quantized path.
    pad_bottom = padding + max(0, Hp_need - (H + 2 * padding))
    xp = jnp.pad(x_codes, ((0, 0), (padding, pad_bottom), (padding, padding),
                           (0, Cin_pad - Cin))).astype(jnp.bfloat16)
    Hp = H + padding + pad_bottom

    # ---- weight path: per-output-channel asymmetric fake-quant (grid-invariant) ----
    w_levels = float((1 << wbits) - 1)
    wf = weight_oihw.astype(jnp.float32).reshape(Cout, Cin * KH * KW)
    w_min = jnp.min(wf, axis=1, keepdims=True)
    w_max = jnp.max(wf, axis=1, keepdims=True)
    w_rng = jnp.maximum(w_max - w_min, 1e-12)            # guard flat channels
    w_scale = w_levels / w_rng
    w_zp = jnp.round(w_min * w_scale)
    wq = jnp.clip(jnp.round(wf * w_scale - w_zp), 0.0, w_levels)
    w_codes = (wq + w_zp).reshape(Cout, Cin, KH, KW)     # == w_scale_c * dequant(w)
    w_hwio = jnp.transpose(w_codes, (2, 3, 1, 0))        # (KH, KW, Cin, Cout)
    w_hwio = jnp.pad(w_hwio, ((0, 0), (0, 0), (0, Cin_pad - Cin), (0, Cout_pad - Cout)))
    w2d = w_hwio.reshape(K, Cout_pad).astype(jnp.bfloat16)

    # ---- fold quant scales + conv bias + BatchNorm into per-channel (scale, shift) ----
    s_bn = gamma.astype(jnp.float32) / jnp.sqrt(running_var.astype(jnp.float32) + eps)
    s_tot = s_bn / (a_scale * w_scale[:, 0])
    t_tot = beta.astype(jnp.float32) + (bias.astype(jnp.float32)
                                        - running_mean.astype(jnp.float32)) * s_bn
    st = jnp.pad(jnp.stack([s_tot, t_tot], axis=0),
                 ((0, 0), (0, Cout_pad - Cout))).astype(jnp.float32)

    # ---- pallas call ----
    kernel = functools.partial(_conv_kernel, KH=KH, KW=KW, stride=stride,
                               TH=TH, WO=WO, last_relu=last_relu)

    # Per-generation VMEM cap: ~100 MiB on v5e/v6e (128 MiB physical), ~51 MiB on v7x
    # (64 MiB physical).
    try:
        vmem_cap = int(pltpu.get_tpu_info().vmem_capacity_bytes)
    except Exception:
        vmem_cap = 128 * 1024 * 1024
    vmem_limit = int(min(100 * 1024 * 1024, int(vmem_cap * 0.8)))

    # The padded image's block index only changes with the batch axis; when the inner
    # grid has >1 step there is no point double-buffering it -> single-buffer and free a
    # full image copy of VMEM (one pipeline bubble per batch element, matters on v7x).
    img_spec_kwargs = {}
    if n_co * n_rows > 1:
        img_spec_kwargs["pipeline_mode"] = pl.Buffered(1)
    x_spec = pl.BlockSpec((1, Hp, Wp, Cin_pad), lambda n, c, r: (n, 0, 0, 0),
                          **img_spec_kwargs)

    if N > 1:
        # Megacore shards the batch axis only, so each core fetches each image once.
        dims = ("parallel", "arbitrary", "arbitrary")
    else:
        # Single image: let the cores split cout/row tiles instead.
        dims = ("arbitrary", "parallel", "parallel")

    out = pl.pallas_call(
        kernel,
        out_shape=jax.ShapeDtypeStruct((N, HO_pad, WO, Cout_pad), out_dtype),
        grid=(N, n_co, n_rows),
        in_specs=[
            x_spec,
            pl.BlockSpec((K, TCO), lambda n, c, r: (0, c)),
            pl.BlockSpec((2, TCO), lambda n, c, r: (0, c)),
        ],
        out_specs=pl.BlockSpec((1, TH, WO, TCO), lambda n, c, r: (n, r, 0, c)),
        compiler_params=pltpu.CompilerParams(
            dimension_semantics=dims,
            vmem_limit_bytes=vmem_limit,
        ),
    )(xp, w2d, st)

    out = out[:, :HO, :, :Cout]                       # strip row/lane padding
    if channels_last:
        return out                                    # NHWC (layer-chaining friendly)
    return jnp.transpose(out, (0, 3, 1, 2))           # NCHW, matches PyTorch


def _reference(x_nchw, weight, bias, gamma, beta, running_mean, running_var, *,
               stride, padding, first_layer, last_relu, abits, wbits, eps=1e-5):
    """Pure-JAX (XLA) reference of the QuanConv2d forward for correctness checking."""
    x = x_nchw.astype(jnp.float32)
    if not first_layer:
        x = jnp.maximum(x, 0.0)
        lv = float((1 << abits) - 1)
        mn, mx = jnp.min(x), jnp.max(x)
        sc = lv / jnp.maximum(mx - mn, 1e-12)
        zp = jnp.round(mn * sc)
        q = jnp.clip(jnp.round(x * sc - zp), 0.0, lv)
        x = (q + zp) / sc
    lv = float((1 << wbits) - 1)
    Cout = weight.shape[0]
    wf = weight.astype(jnp.float32).reshape(Cout, -1)
    mn = jnp.min(wf, axis=1, keepdims=True)
    mx = jnp.max(wf, axis=1, keepdims=True)
    sc = lv / jnp.maximum(mx - mn, 1e-12)
    zp = jnp.round(mn * sc)
    q = jnp.clip(jnp.round(wf * sc - zp), 0.0, lv)
    wd = ((q + zp) / sc).reshape(weight.shape)
    y = lax.conv_general_dilated(x, wd, (stride, stride),
                                 [(padding, padding), (padding, padding)],
                                 dimension_numbers=("NCHW", "OIHW", "NCHW"))
    y = y + bias[None, :, None, None]
    s = gamma / jnp.sqrt(running_var + eps)
    y = (y - running_mean[None, :, None, None]) * s[None, :, None, None] \
        + beta[None, :, None, None]
    if last_relu:
        y = jnp.maximum(y, 0.0)
    return y


if __name__ == "__main__":
    key = jax.random.PRNGKey(0)
    kx, kw, kb, kg, kbe, km, kv = jax.random.split(key, 7)

    # small, nin.py-like middle layer: Cin=4 -> Cout=8, 3x3, stride 1, pad 1
    N, Cin, H, W = 2, 4, 16, 16
    Cout, KH, KW = 8, 3, 3

    x = jax.random.normal(kx, (N, Cin, H, W), dtype=jnp.float32)

    fan_in = Cin * KH * KW
    bound = 1.0 / (fan_in ** 0.5)
    weight = jax.random.uniform(kw, (Cout, Cin, KH, KW), jnp.float32, -bound, bound)
    bias = jax.random.uniform(kb, (Cout,), jnp.float32, -bound, bound)
    gamma = 1.0 + 0.1 * jax.random.normal(kg, (Cout,), dtype=jnp.float32)
    beta = 0.1 * jax.random.normal(kbe, (Cout,), dtype=jnp.float32)
    running_mean = 0.1 * jax.random.normal(km, (Cout,), dtype=jnp.float32)
    running_var = jax.random.uniform(kv, (Cout,), jnp.float32, 0.5, 1.5)

    fwd = jax.jit(functools.partial(quan_conv2d, stride=1, padding=1,
                                    first_layer=0, last_relu=0, abits=8, wbits=8))
    out = jax.block_until_ready(fwd(x, weight, bias, gamma, beta,
                                    running_mean, running_var))
    assert out.shape == (N, Cout, H, W), out.shape
    assert bool(jnp.all(jnp.isfinite(out)))

    ref = _reference(x, weight, bias, gamma, beta, running_mean, running_var,
                     stride=1, padding=1, first_layer=0, last_relu=0,
                     abits=8, wbits=8)
    max_err = float(jnp.max(jnp.abs(out.astype(jnp.float32) - ref)))
    assert max_err < 2e-3, max_err

    # Layer-chaining output format (bf16 NHWC: no f32 writeback, no NCHW transpose).
    fwd_nhwc = jax.jit(functools.partial(quan_conv2d, stride=1, padding=1,
                                         first_layer=0, last_relu=0, abits=8, wbits=8,
                                         out_dtype=jnp.bfloat16, channels_last=True))
    out2 = jax.block_until_ready(fwd_nhwc(x, weight, bias, gamma, beta,
                                          running_mean, running_var))
    assert out2.shape == (N, H, W, Cout), out2.shape
    assert bool(jnp.all(jnp.isfinite(out2.astype(jnp.float32))))

    print("KERNEL_OK")
</pallas_src>

<mosaic_0001>
module attributes {stable_mosaic.version = 11 : i64} {
  func.func @_conv_kernel(%arg0: i32, %arg1: i32, %arg2: i32, %arg3: memref<1x18x18x4xbf16, #tpu.memory_space<vmem>>, %arg4: memref<36x128xbf16, #tpu.memory_space<vmem>>, %arg5: memref<2x128xf32, #tpu.memory_space<vmem>>, %arg6: memref<1x16x16x128xf32, #tpu.memory_space<vmem>>) attributes {dimension_semantics = [#tpu.dimension_semantics<parallel>, #tpu.dimension_semantics<arbitrary>, #tpu.dimension_semantics<arbitrary>], iteration_bounds = array<i64: 2, 1, 1>, scalar_prefetch = 0 : i64, scratch_operands = 0 : i64, tpu.core_type = #tpu.core_type<tc>, window_params = [{transform_indices = @transform_0, window_bounds = array<i64: 1, 18, 18, 4>}, {transform_indices = @transform_1, window_bounds = array<i64: 36, 128>}, {transform_indices = @transform_2, window_bounds = array<i64: 2, 128>}, {transform_indices = @transform_3, window_bounds = array<i64: 1, 16, 16, 128>}]} {
    %c16_i32 = arith.constant 16 : i32
    %0 = arith.muli %arg2, %c16_i32 : i32
    %1 = tpu.assume_multiple %0, 16 : i32
    %c0 = arith.constant 0 : index
    %2 = arith.index_cast %1 : i32 to index
    %c0_0 = arith.constant 0 : index
    %c0_1 = arith.constant 0 : index
    %3 = vector.load %arg3[%c0, %2, %c0_0, %c0_1] : memref<1x18x18x4xbf16, #tpu.memory_space<vmem>>, vector<1x18x18x4xbf16>
    %4 = vector.extract_strided_slice %3 {offsets = [0, 0, 0, 0], sizes = [1, 16, 16, 4], strides = [1, 1, 1, 1]} : vector<1x18x18x4xbf16> to vector<1x16x16x4xbf16>
    %5 = vector.extract_strided_slice %3 {offsets = [0, 0, 1, 0], sizes = [1, 16, 16, 4], strides = [1, 1, 1, 1]} : vector<1x18x18x4xbf16> to vector<1x16x16x4xbf16>
    %6 = vector.extract_strided_slice %3 {offsets = [0, 0, 2, 0], sizes = [1, 16, 16, 4], strides = [1, 1, 1, 1]} : vector<1x18x18x4xbf16> to vector<1x16x16x4xbf16>
    %7 = vector.extract_strided_slice %3 {offsets = [0, 1, 0, 0], sizes = [1, 16, 16, 4], strides = [1, 1, 1, 1]} : vector<1x18x18x4xbf16> to vector<1x16x16x4xbf16>
    %8 = vector.extract_strided_slice %3 {offsets = [0, 1, 1, 0], sizes = [1, 16, 16, 4], strides = [1, 1, 1, 1]} : vector<1x18x18x4xbf16> to vector<1x16x16x4xbf16>
    %9 = vector.extract_strided_slice %3 {offsets = [0, 1, 2, 0], sizes = [1, 16, 16, 4], strides = [1, 1, 1, 1]} : vector<1x18x18x4xbf16> to vector<1x16x16x4xbf16>
    %10 = vector.extract_strided_slice %3 {offsets = [0, 2, 0, 0], sizes = [1, 16, 16, 4], strides = [1, 1, 1, 1]} : vector<1x18x18x4xbf16> to vector<1x16x16x4xbf16>
    %11 = vector.extract_strided_slice %3 {offsets = [0, 2, 1, 0], sizes = [1, 16, 16, 4], strides = [1, 1, 1, 1]} : vector<1x18x18x4xbf16> to vector<1x16x16x4xbf16>
    %12 = vector.extract_strided_slice %3 {offsets = [0, 2, 2, 0], sizes = [1, 16, 16, 4], strides = [1, 1, 1, 1]} : vector<1x18x18x4xbf16> to vector<1x16x16x4xbf16>
    %13 = tpu.concatenate %4, %5, %6, %7, %8, %9, %10, %11, %12 in 3 : vector<1x16x16x4xbf16>, vector<1x16x16x4xbf16>, vector<1x16x16x4xbf16>, vector<1x16x16x4xbf16>, vector<1x16x16x4xbf16>, vector<1x16x16x4xbf16>, vector<1x16x16x4xbf16>, vector<1x16x16x4xbf16>, vector<1x16x16x4xbf16> -> vector<1x16x16x36xbf16>
    %14 = vector.shape_cast %13 : vector<1x16x16x36xbf16> to vector<256x36xbf16>
    %c0_2 = arith.constant 0 : index
    %c0_3 = arith.constant 0 : index
    %15 = vector.load %arg4[%c0_2, %c0_3] : memref<36x128xbf16, #tpu.memory_space<vmem>>, vector<36x128xbf16>
    %cst = arith.constant dense<0.000000e+00> : vector<256x128xf32>
    %16 = tpu.matmul %14, %15, %cst {dimension_numbers = #tpu.dot_dimension_numbers<[1], [0], [0], [1], [0, 0, 1, 1], [], []>} : vector<256x36xbf16>, vector<36x128xbf16>, vector<256x128xf32> -> vector<256x128xf32>
    %17 = vector.shape_cast %16 : vector<256x128xf32> to vector<1x16x16x128xf32>
    %c0_4 = arith.constant 0 : index
    %c0_5 = arith.constant 0 : index
    %18 = vector.load %arg5[%c0_4, %c0_5] : memref<2x128xf32, #tpu.memory_space<vmem>>, vector<2x128xf32>
    %19 = vector.extract_strided_slice %18 {offsets = [0, 0], sizes = [1, 128], strides = [1, 1]} : vector<2x128xf32> to vector<1x128xf32>
    %20 = vector.shape_cast %19 : vector<1x128xf32> to vector<128xf32>
    %21 = vector.shape_cast %20 : vector<128xf32> to vector<1x1x1x128xf32>
    %22 = vector.broadcast %21 : vector<1x1x1x128xf32> to vector<1x16x16x128xf32>
    %23 = arith.mulf %17, %22 : vector<1x16x16x128xf32>
    %24 = vector.extract_strided_slice %18 {offsets = [1, 0], sizes = [1, 128], strides = [1, 1]} : vector<2x128xf32> to vector<1x128xf32>
    %25 = vector.shape_cast %24 : vector<1x128xf32> to vector<128xf32>
    %26 = vector.shape_cast %25 : vector<128xf32> to vector<1x1x1x128xf32>
    %27 = vector.broadcast %26 : vector<1x1x1x128xf32> to vector<1x16x16x128xf32>
    %28 = arith.addf %23, %27 : vector<1x16x16x128xf32>
    %c0_6 = arith.constant 0 : index
    %c0_7 = arith.constant 0 : index
    %c0_8 = arith.constant 0 : index
    %c0_9 = arith.constant 0 : index
    %29 = vector.load %arg6[%c0_6, %c0_7, %c0_8, %c0_9] : memref<1x16x16x128xf32, #tpu.memory_space<vmem>>, vector<1x16x16x128xf32>
    tpu.vector_store %arg6[%c0_6, %c0_7, %c0_8, %c0_9], %28 {strides = array<i32>} : memref<1x16x16x128xf32, #tpu.memory_space<vmem>>, vector<1x16x16x128xf32>,
    return
  }
  func.func @transform_0(%arg0: i32, %arg1: i32, %arg2: i32) -> (i32, i32, i32, i32) {
    %c0_i32 = arith.constant 0 : i32
    %c0_i32_0 = arith.constant 0 : i32
    %c0_i32_1 = arith.constant 0 : i32
    %c0_i32_2 = arith.constant 0 : i32
    return %arg0, %c0_i32, %c0_i32_0, %c0_i32_1 : i32, i32, i32, i32
  }
  func.func @transform_1(%arg0: i32, %arg1: i32, %arg2: i32) -> (i32, i32) {
    %c0_i32 = arith.constant 0 : i32
    %c0_i32_0 = arith.constant 0 : i32
    return %c0_i32, %arg1 : i32, i32
  }
  func.func @transform_2(%arg0: i32, %arg1: i32, %arg2: i32) -> (i32, i32) {
    %c0_i32 = arith.constant 0 : i32
    %c0_i32_0 = arith.constant 0 : i32
    return %c0_i32, %arg1 : i32, i32
  }
  func.func @transform_3(%arg0: i32, %arg1: i32, %arg2: i32) -> (i32, i32, i32, i32) {
    %c0_i32 = arith.constant 0 : i32
    %c0_i32_0 = arith.constant 0 : i32
    return %arg0, %arg2, %c0_i32, %arg1 : i32, i32, i32, i32
  }
}

</mosaic_0001>

<llo_original>
// kernel: quan_conv2d.1
$region0: #{quan_conv2d.1}
  #allocation0 [shape = 'u32[]', space=smem, size = 0x4, offset = 0x4, fixed_abs, tag = 'smem constant byte address 0x4 - core index']
  #allocation1 [shape = 'u32[144,128]{1,0:T(1,128)}', space=vmem, size = 0x12000, scoped, tag = 'internal scratch']
  %s0 = inlined_call_operand.hbm [shape: bf16[2,18,18,4], index: 0, kind: input, shape index: {}]
  %s1 = inlined_call_operand.hbm [shape: bf16[36,128], index: 1, kind: input, shape index: {}]
  %s2 = inlined_call_operand.hbm [shape: f32[2,128], index: 2, kind: input, shape index: {}]
  %s3 = inlined_call_operand.hbm [shape: f32[2,16,16,128], index: 3, kind: output, shape index: {}]
  %s4 = sld [smem:[#allocation0]]
  $region57: #{quan_conv2d.1} parent=0
    _
  %s6 = ssub.s32 1, %s4
  %s7 = scalar_select 0, %s6, %s4
  $region1: #{quan_conv2d.1} parent=0
    #allocation2 [shape = 'u8[221184]{0}', space=vmem, size = 0x36000, scoped, tag = 'input window, operand 0']
    #allocation3 [shape = 's32[2]{0}', space=sflag, size = 0x8, scoped, tag = 'scoped memory for quan_conv2d.1']
    #allocation4 [shape = 's32[2]{0}', space=sflag, size = 0x8, scoped, tag = 'scoped memory for quan_conv2d.1']
    #allocation5 [shape = 'u8[10240]{0}', space=vmem, size = 0x2800, scoped, tag = 'input window, operand 1, single buffered']
    #allocation6 [shape = 's32[1]{0}', space=sflag, size = 0x4, scoped, tag = 'scoped memory for quan_conv2d.1']
    #allocation7 [shape = 'u8[1024]{0}', space=vmem, size = 0x400, scoped, tag = 'input window, operand 2, single buffered']
    #allocation8 [shape = 'u8[262144]{0}', space=vmem, size = 0x40000, scoped, tag = 'output window, operand 0']
    %8 = vsyncpa [#allocation3], 0
    %s9 = scalar_lea.sflag [#allocation3], 1
    %10 = vsyncpa %s9, 0
    %11 = vsyncpa [#allocation6], 0
    %12 = vsyncpa [#allocation4], 0
    %s13 = scalar_lea.sflag [#allocation4], 1
    %14 = vsyncpa %s13, 0
    loop: start=0, step=1, limit=4
    $region2: #{quan_conv2d.1} parent=1 // loop_pre_header
      _
    $region3: #{quan_conv2d.1} parent=1 // loop_header
      %s16 = sphi 0, %s20
      %p17 = scmp.ge.s32.totalorder %s16, 4
      %s23 = sphi 0, %s42
      %s24 = sphi 0, %s38
      %s25 = sphi 0, %s34
      %s26 = sphi 0, %s23
      %s27 = sphi 0, %s24
      %s28 = sphi 0, %s25
      %s29 = sphi 0, %s26
      %s30 = sphi 0, %s27
      %s31 = sphi 0, %s28
      %s45 = sphi 0, %s47
      %s48 = sphi 0, %s45
      %s49 = sphi 0, %s48
      %s65 = sphi 0, %s49
      %s71 = sphi 0, %s73
      %s74 = sphi 0, %s71
      %s75 = sphi 0, %s74
      %s91 = sphi 0, %s75
      %s97 = sphi 0, %s99
      %s100 = sphi 0, %s97
      %s101 = sphi 0, %s100
      %s117 = sphi 0, %s101
      %s127 = sphi 0, %s129
      %s130 = sphi 0, %s127
      %s131 = sphi 0, %s130
      %s147 = sphi 0, %s131
    $region4: #{quan_conv2d.1} parent=1 // loop_header_branch
      %19 = sbr.rel (%p17) target = $region8
    $region5: #{quan_conv2d.1} parent=1 // loop_body
      %s21 = ssub.s32 %s16, 1
      %s22 = ssub.s32 %s16, 2
      %s32 = sadd.s32 1, %s25
      %p33 = scmp.ge.s32.totalorder %s32, 1
      %s34 = scalar_select %p33, 0, %s32
      %s35 = sadd.s32 1, %s24
      %s36 = scalar_select %p33, %s35, %s24
      %p37 = scmp.ge.s32.totalorder %s36, 1
      %s38 = scalar_select %p37, 0, %s36
      %s39 = sadd.s32 1, %s23
      %s40 = scalar_select %p37, %s39, %s23
      %p41 = scmp.ge.s32.totalorder %s40, 2
      %s42 = scalar_select %p41, 0, %s40
      %s43 = ssub.s32 %s23, %s42
      %p44 = scmp.eq.s32.totalorder %s43, 0
      %s46 = sadd.s32 %s45, 1
      %s47 = scalar_select %p44, %s45, %s46
      %p50 = pneg %p44
      %p51 = scmp.eq.s32.totalorder %s16, 1
      %p52 = por %p50, %p51
      %p53 = scmp.ne.s32.totalorder %s45, %s48
      %p54 = scmp.eq.s32.totalorder %s16, 0
      %p55 = por %p53, %p54
      %p56 = scmp.ne.s32.totalorder %s45, %s48
      %p57 = scmp.eq.s32.totalorder %s21, 1
      %p58 = por %p56, %p57
      %p59 = scmp.ne.s32.totalorder %s48, %s49
      %p60 = scmp.eq.s32.totalorder %s21, 0
      %p61 = por %p59, %p60
      %p62 = scmp.ne.s32.totalorder %s48, %s49
      %p63 = scmp.eq.s32.totalorder %s22, 1
      %p64 = por %p62, %p63
      %p66 = scmp.ne.s32.totalorder %s49, %s65
      %p67 = scmp.eq.s32.totalorder %s22, 0
      %p68 = por %p66, %p67
      %s69 = ssub.s32 %s24, %s38
      %p70 = scmp.eq.s32.totalorder %s69, 0
      %s72 = sadd.s32 %s71, 1
      %s73 = scalar_select %p70, %s71, %s72
      %p76 = pneg %p70
      %p77 = scmp.eq.s32.totalorder %s16, 1
      %p78 = por %p76, %p77
      %p79 = scmp.ne.s32.totalorder %s71, %s74
      %p80 = scmp.eq.s32.totalorder %s16, 0
      %p81 = por %p79, %p80
      %p82 = scmp.ne.s32.totalorder %s71, %s74
      %p83 = scmp.eq.s32.totalorder %s21, 1
      %p84 = por %p82, %p83
      %p85 = scmp.ne.s32.totalorder %s74, %s75
      %p86 = scmp.eq.s32.totalorder %s21, 0
      %p87 = por %p85, %p86
      %p88 = scmp.ne.s32.totalorder %s74, %s75
      %p89 = scmp.eq.s32.totalorder %s22, 1
      %p90 = por %p88, %p89
      %p92 = scmp.ne.s32.totalorder %s75, %s91
      %p93 = scmp.eq.s32.totalorder %s22, 0
      %p94 = por %p92, %p93
      %s95 = ssub.s32 %s24, %s38
      %p96 = scmp.eq.s32.totalorder %s95, 0
      %s98 = sadd.s32 %s97, 1
      %s99 = scalar_select %p96, %s97, %s98
      %p102 = pneg %p96
      %p103 = scmp.eq.s32.totalorder %s16, 1
      %p104 = por %p102, %p103
      %p105 = scmp.ne.s32.totalorder %s97, %s100
      %p106 = scmp.eq.s32.totalorder %s16, 0
      %p107 = por %p105, %p106
      %p108 = scmp.ne.s32.totalorder %s97, %s100
      %p109 = scmp.eq.s32.totalorder %s21, 1
      %p110 = por %p108, %p109
      %p111 = scmp.ne.s32.totalorder %s100, %s101
      %p112 = scmp.eq.s32.totalorder %s21, 0
      %p113 = por %p111, %p112
      %p114 = scmp.ne.s32.totalorder %s100, %s101
      %p115 = scmp.eq.s32.totalorder %s22, 1
      %p116 = por %p114, %p115
      %p118 = scmp.ne.s32.totalorder %s101, %s117
      %p119 = scmp.eq.s32.totalorder %s22, 0
      %p120 = por %p118, %p119
      %s121 = ssub.s32 %s23, %s42
      %s122 = ssub.s32 %s25, %s34
      %s123 = sor.u32 %s121, %s122
      %s124 = ssub.s32 %s24, %s38
      %s125 = sor.u32 %s123, %s124
      %p126 = scmp.eq.s32.totalorder %s125, 0
      %s128 = sadd.s32 %s127, 1
      %s129 = scalar_select %p126, %s127, %s128
      %p132 = pneg %p126
      %p133 = scmp.eq.s32.totalorder %s16, 1
      %p134 = por %p132, %p133
      %p135 = scmp.ne.s32.totalorder %s127, %s130
      %p136 = scmp.eq.s32.totalorder %s16, 0
      %p137 = por %p135, %p136
      %p138 = scmp.ne.s32.totalorder %s127, %s130
      %p139 = scmp.eq.s32.totalorder %s21, 1
      %p140 = por %p138, %p139
      %p141 = scmp.ne.s32.totalorder %s130, %s131
      %p142 = scmp.eq.s32.totalorder %s21, 0
      %p143 = por %p141, %p142
      %p144 = scmp.ne.s32.totalorder %s130, %s131
      %p145 = scmp.eq.s32.totalorder %s22, 1
      %p146 = por %p144, %p145
      %p148 = scmp.ne.s32.totalorder %s131, %s147
      %p149 = scmp.eq.s32.totalorder %s22, 0
      %p150 = por %p148, %p149
      %p151 = scmp.le.s32.totalorder 1, %s16
      %p152 = scmp.lt.s32.totalorder %s16, 3
      %p153 = pnand %p151, %p152
      %p154 = pneg %p153
      // Predicated region
      $region9: #{quan_conv2d.1} parent=5 // pred_check
        _
      $region10: #{quan_conv2d.1} parent=5 // pred_check_branch
        %156 = sbr.rel (%p153) target = $region12
      $region11: #{quan_conv2d.1} parent=5 // pred_region
        %s157 = ssub.s32 %s16, 1
        // Predicated region
        $region13: #{quan_conv2d.1} parent=11 // pred_check
          %p158 = pneg %p87
        $region14: #{quan_conv2d.1} parent=11 // pred_check_branch
          %160 = sbr.rel (%p158) target = $region16
        $region15: #{quan_conv2d.1} parent=11 // pred_region
          %s162 = ssub.s32 320, 320
          %163 = vsyncadd [#allocation6], %s162
          %s164 = smul.addr %s27, 64
          %s165 = scalar_lea.hbm %s1, %s164
          %s166 = sshll.u32 [#allocation5], 4
          %s167 = int_to_ptr.vmem [resolvable:$true] %s166
          %172 = dma.hbm_to_vmem [thread:$0]  %s165, 320, %s167, [#allocation6], 64, 64, 4
        $region16: #{quan_conv2d.1} parent=11 // pred_fallthru
          _
        // Predicated region
        $region17: #{quan_conv2d.1} parent=11 // pred_check
          %p173 = pneg %p113
        $region18: #{quan_conv2d.1} parent=11 // pred_check_branch
          %175 = sbr.rel (%p173) target = $region20
        $region19: #{quan_conv2d.1} parent=11 // pred_region
          %s177 = ssub.s32 32, 32
          %178 = vsyncadd [#allocation6], %s177
          %s179 = smul.addr %s27, 32
          %s180 = scalar_lea.hbm %s2, %s179
          %s182 = sshll.u32 [#allocation7], 4
          %s183 = int_to_ptr.vmem [resolvable:$true] %s182
          %185 = dma.hbm_to_vmem [thread:$0]  %s180, 32, %s183, [#allocation6]
        $region20: #{quan_conv2d.1} parent=11 // pred_fallthru
          _
      $region12: #{quan_conv2d.1} parent=5 // pred_fallthru
        _
      %p186 = scmp.lt.s32.totalorder %s16, 2
      // Predicated region
      $region21: #{quan_conv2d.1} parent=5 // pred_check
        %p187 = pneg %p186
      $region22: #{quan_conv2d.1} parent=5 // pred_check_branch
        %189 = sbr.rel (%p187) target = $region24
      $region23: #{quan_conv2d.1} parent=5 // pred_region
        // Predicated region
        $region25: #{quan_conv2d.1} parent=23 // pred_check
          %p190 = pneg %p55
        $region26: #{quan_conv2d.1} parent=23 // pred_check_branch
          %192 = sbr.rel (%p190) target = $region28
        $region27: #{quan_conv2d.1} parent=23 // pred_region
          %s193 = sand.u32 %s45, 1
          %s194 = scalar_lea.sflag [#allocation3], %s193
          %s195 = sand.u32 %s45, 1
          %s196 = smul.addr %s195, 216
          %s197 = scalar_lea.vmem [#allocation2], %s196
          %s199 = ssub.s32 3456, 3456
          %200 = vsyncadd %s194, %s199
          %s201 = smul.addr %s23, 54
          %s202 = smul.addr %s201, 64
          %s203 = scalar_lea.hbm %s0, %s202
          %s204 = sshll.u32 %s197, 4
          %s205 = int_to_ptr.vmem [resolvable:$true] %s204
          %210 = dma.hbm_to_vmem [thread:$0]  %s203, 3456, %s205, %s194, 64, 64, 4
        $region28: #{quan_conv2d.1} parent=23 // pred_fallthru
          _
      $region24: #{quan_conv2d.1} parent=5 // pred_fallthru
        _
      %p211 = scmp.le.s32.totalorder 1, %s16
      %p212 = scmp.lt.s32.totalorder %s16, 3
      %p213 = pnand %p211, %p212
      %p214 = pneg %p213
      // Predicated region
      $region29: #{quan_conv2d.1} parent=5 // pred_check
        _
      $region30: #{quan_conv2d.1} parent=5 // pred_check_branch
        %216 = sbr.rel (%p213) target = $region32
      $region31: #{quan_conv2d.1} parent=5 // pred_region
        %s217 = ssub.s32 %s16, 1
        %s218 = sand.u32 %s48, 1
        %s219 = scalar_lea.sflag [#allocation3], %s218
        %s220 = sand.u32 %s48, 1
        %s221 = smul.addr %s220, 216
        %s222 = scalar_lea.vmem [#allocation2], %s221
        // Predicated region
        $region33: #{quan_conv2d.1} parent=31 // pred_check
          %p223 = pneg %p61
        $region34: #{quan_conv2d.1} parent=31 // pred_check_branch
          %225 = sbr.rel (%p223) target = $region36
        $region35: #{quan_conv2d.1} parent=31 // pred_region
          %226 = dma.done %s219, 3456
        $region36: #{quan_conv2d.1} parent=31 // pred_fallthru
          _
        // Predicated region
        $region37: #{quan_conv2d.1} parent=31 // pred_check
          %p227 = pneg %p87
        $region38: #{quan_conv2d.1} parent=31 // pred_check_branch
          %229 = sbr.rel (%p227) target = $region40
        $region39: #{quan_conv2d.1} parent=31 // pred_region
          %230 = dma.done [#allocation6], 320
        $region40: #{quan_conv2d.1} parent=31 // pred_fallthru
          _
        // Predicated region
        $region41: #{quan_conv2d.1} parent=31 // pred_check
          %p231 = pneg %p113
        $region42: #{quan_conv2d.1} parent=31 // pred_check_branch
          %233 = sbr.rel (%p231) target = $region44
        $region43: #{quan_conv2d.1} parent=31 // pred_region
          %234 = dma.done [#allocation6], 32
        $region44: #{quan_conv2d.1} parent=31 // pred_fallthru
          _
        %s235 = sand.u32 %s48, 1
        %s236 = scalar_lea.sflag [#allocation3], %s235
        %s237 = sand.u32 %s48, 1
        %s238 = smul.addr %s237, 216
        %s239 = scalar_lea.vmem [#allocation2], %s238
        %p240 = pneg %p61
        %p241 = pneg %p58
        %p242 = pneg %p87
        %p243 = pneg %p84
        %p244 = pneg %p113
        %p245 = pneg %p110
        %p246 = pneg %p143
        %p247 = pneg %p140
        %s248 = sand.u32 %s130, 1
        %s249 = scalar_lea.sflag [#allocation4], %s248
        %s250 = sand.u32 %s130, 1
        %s251 = smul.addr %s250, 256
        %s252 = scalar_lea.vmem [#allocation8], %s251
        %s253 = smul.u32 16, %s28
        %s255 = smul.u32 %s28, 16
        %s256 = smul.u32 %s255, 3
        %s257 = smul.addr %s256, 4
        %s258 = scalar_lea.vmem %s222, %s257 [#allocation2]
        %v259 = vld [vmem:[%s258] sm:$0xf]
        %v260 = vld [vmem:[%s258 + $0x4] sm:$0xf]
        %v261 = vld [vmem:[%s258 + $0x8] sm:$0x1]
        %v262 = vld [vmem:[%s258 + $0xc] sm:$0xf]
        %v263 = vld [vmem:[%s258 + $0x10] sm:$0xf]
        %v264 = vld [vmem:[%s258 + $0x14] sm:$0x1]
        %v265 = vld [vmem:[%s258 + $0x18] sm:$0xf]
        %v266 = vld [vmem:[%s258 + $0x1c] sm:$0xf]
        %v267 = vld [vmem:[%s258 + $0x20] sm:$0x1]
        %v268 = vld [vmem:[%s258 + $0x24] sm:$0xf]
        %v269 = vld [vmem:[%s258 + $0x28] sm:$0xf]
        %v270 = vld [vmem:[%s258 + $0x2c] sm:$0x1]
        %v271 = vld [vmem:[%s258 + $0x30] sm:$0xf]
        %v272 = vld [vmem:[%s258 + $0x34] sm:$0xf]
        %v273 = vld [vmem:[%s258 + $0x38] sm:$0x1]
        %v274 = vld [vmem:[%s258 + $0x3c] sm:$0xf]
        %v275 = vld [vmem:[%s258 + $0x40] sm:$0xf]
        %v276 = vld [vmem:[%s258 + $0x44] sm:$0x1]
        %v277 = vld [vmem:[%s258 + $0x48] sm:$0xf]
        %v278 = vld [vmem:[%s258 + $0x4c] sm:$0xf]
        %v279 = vld [vmem:[%s258 + $0x50] sm:$0x1]
        %v280 = vld [vmem:[%s258 + $0x54] sm:$0xf]
        %v281 = vld [vmem:[%s258 + $0x58] sm:$0xf]
        %v282 = vld [vmem:[%s258 + $0x5c] sm:$0x1]
        %v283 = vld [vmem:[%s258 + $0x60] sm:$0xf]
        %v284 = vld [vmem:[%s258 + $0x64] sm:$0xf]
        %v285 = vld [vmem:[%s258 + $0x68] sm:$0x1]
        %v286 = vld [vmem:[%s258 + $0x6c] sm:$0xf]
        %v287 = vld [vmem:[%s258 + $0x70] sm:$0xf]
        %v288 = vld [vmem:[%s258 + $0x74] sm:$0x1]
        %v289 = vld [vmem:[%s258 + $0x78] sm:$0xf]
        %v290 = vld [vmem:[%s258 + $0x7c] sm:$0xf]
        %v291 = vld [vmem:[%s258 + $0x80] sm:$0x1]
        %v292 = vld [vmem:[%s258 + $0x84] sm:$0xf]
        %v293 = vld [vmem:[%s258 + $0x88] sm:$0xf]
        %v294 = vld [vmem:[%s258 + $0x8c] sm:$0x1]
        %v295 = vld [vmem:[%s258 + $0x90] sm:$0xf]
        %v296 = vld [vmem:[%s258 + $0x94] sm:$0xf]
        %v297 = vld [vmem:[%s258 + $0x98] sm:$0x1]
        %v298 = vld [vmem:[%s258 + $0x9c] sm:$0xf]
        %v299 = vld [vmem:[%s258 + $0xa0] sm:$0xf]
        %v300 = vld [vmem:[%s258 + $0xa4] sm:$0x1]
        %v301 = vld [vmem:[%s258 + $0xa8] sm:$0xf]
        %v302 = vld [vmem:[%s258 + $0xac] sm:$0xf]
        %v303 = vld [vmem:[%s258 + $0xb0] sm:$0x1]
        %v304 = vld [vmem:[%s258 + $0xb4] sm:$0xf]
        %v305 = vld [vmem:[%s258 + $0xb8] sm:$0xf]
        %v306 = vld [vmem:[%s258 + $0xbc] sm:$0x1]
        %v307 = vld [vmem:[%s258 + $0xc0] sm:$0xf]
        %v308 = vld [vmem:[%s258 + $0xc4] sm:$0xf]
        %v309 = vld [vmem:[%s258 + $0xc8] sm:$0x1]
        %v310 = vld [vmem:[%s258 + $0xcc] sm:$0xf]
        %v311 = vld [vmem:[%s258 + $0xd0] sm:$0xf]
        %v312 = vld [vmem:[%s258 + $0xd4] sm:$0x1]
        %v345 = vunpack.c.l.b16 %v259
        %v346 = vunpack.c.l.b16 %v260
        %v347 = vunpack.c.l.b16 %v262
        %v348 = vunpack.c.l.b16 %v263
        %v349 = vunpack.c.l.b16 %v265
        %v350 = vunpack.c.l.b16 %v266
        %v351 = vunpack.c.l.b16 %v268
        %v352 = vunpack.c.l.b16 %v269
        %v353 = vunpack.c.l.b16 %v271
        %v354 = vunpack.c.l.b16 %v272
        %v355 = vunpack.c.l.b16 %v274
        %v356 = vunpack.c.l.b16 %v275
        %v357 = vunpack.c.l.b16 %v277
        %v358 = vunpack.c.l.b16 %v278
        %v359 = vunpack.c.l.b16 %v280
        %v360 = vunpack.c.l.b16 %v281
        %v361 = vunpack.c.l.b16 %v283
        %v362 = vunpack.c.l.b16 %v284
        %v363 = vunpack.c.l.b16 %v286
        %v364 = vunpack.c.l.b16 %v287
        %v365 = vunpack.c.l.b16 %v289
        %v366 = vunpack.c.l.b16 %v290
        %v367 = vunpack.c.l.b16 %v292
        %v368 = vunpack.c.l.b16 %v293
        %v369 = vunpack.c.l.b16 %v295
        %v370 = vunpack.c.l.b16 %v296
        %v371 = vunpack.c.l.b16 %v298
        %v372 = vunpack.c.l.b16 %v299
        %v373 = vunpack.c.l.b16 %v301
        %v374 = vunpack.c.l.b16 %v302
        %v375 = vunpack.c.l.b16 %v304
        %v376 = vunpack.c.l.b16 %v305
        %v377 = vpack.c.b16 %v346, %v345
        %v378 = vpack.c.b16 %v348, %v347
        %v379 = vpack.c.b16 %v350, %v349
        %v380 = vpack.c.b16 %v352, %v351
        %v381 = vpack.c.b16 %v354, %v353
        %v382 = vpack.c.b16 %v356, %v355
        %v383 = vpack.c.b16 %v358, %v357
        %v384 = vpack.c.b16 %v360, %v359
        %v385 = vpack.c.b16 %v362, %v361
        %v386 = vpack.c.b16 %v364, %v363
        %v387 = vpack.c.b16 %v366, %v365
        %v388 = vpack.c.b16 %v368, %v367
        %v389 = vpack.c.b16 %v370, %v369
        %v390 = vpack.c.b16 %v372, %v371
        %v391 = vpack.c.b16 %v374, %v373
        %v392 = vpack.c.b16 %v376, %v375
        %v409 = vunpack.c.l.b16 %v261
        %v410 = vunpack.c.l.b16 %v264
        %v411 = vunpack.c.l.b16 %v267
        %v412 = vunpack.c.l.b16 %v270
        %v413 = vunpack.c.l.b16 %v273
        %v414 = vunpack.c.l.b16 %v276
        %v415 = vunpack.c.l.b16 %v279
        %v416 = vunpack.c.l.b16 %v282
        %v417 = vunpack.c.l.b16 %v285
        %v418 = vunpack.c.l.b16 %v288
        %v419 = vunpack.c.l.b16 %v291
        %v420 = vunpack.c.l.b16 %v294
        %v421 = vunpack.c.l.b16 %v297
        %v422 = vunpack.c.l.b16 %v300
        %v423 = vunpack.c.l.b16 %v303
        %v424 = vunpack.c.l.b16 %v306
        %v425 = vpack.c.b16 %v409, %v409
        %v426 = vpack.c.b16 %v410, %v410
        %v427 = vpack.c.b16 %v411, %v411
        %v428 = vpack.c.b16 %v412, %v412
        %v429 = vpack.c.b16 %v413, %v413
        %v430 = vpack.c.b16 %v414, %v414
        %v431 = vpack.c.b16 %v415, %v415
        %v432 = vpack.c.b16 %v416, %v416
        %v433 = vpack.c.b16 %v417, %v417
        %v434 = vpack.c.b16 %v418, %v418
        %v435 = vpack.c.b16 %v419, %v419
        %v436 = vpack.c.b16 %v420, %v420
        %v437 = vpack.c.b16 %v421, %v421
        %v438 = vpack.c.b16 %v422, %v422
        %v439 = vpack.c.b16 %v423, %v423
        %v440 = vpack.c.b16 %v424, %v424
        %vm441 = vsmask.f32 7424
        %v443 = vshrl.u32 %v377, 16
        %v445 = vshll.u32 %v377, 16
        %v447 = vrot.slane %v445, 1
        %v448 = vor.u32 %v443, %v447
        %v450 = vshll.u32 %v425, 16
        %v452 = vrot.slane %v450, 1
        %v453 = vsel %vm441, %v448, %v452
        %v455 = vshrl.u32 %v378, 16
        %v457 = vshll.u32 %v378, 16
        %v459 = vrot.slane %v457, 1
        %v460 = vor.u32 %v455, %v459
        %v462 = vshll.u32 %v426, 16
        %v464 = vrot.slane %v462, 1
        %v465 = vsel %vm441, %v460, %v464
        %v467 = vshrl.u32 %v379, 16
        %v469 = vshll.u32 %v379, 16
        %v471 = vrot.slane %v469, 1
        %v472 = vor.u32 %v467, %v471
        %v474 = vshll.u32 %v427, 16
        %v476 = vrot.slane %v474, 1
        %v477 = vsel %vm441, %v472, %v476
        %v479 = vshrl.u32 %v380, 16
        %v481 = vshll.u32 %v380, 16
        %v483 = vrot.slane %v481, 1
        %v484 = vor.u32 %v479, %v483
        %v486 = vshll.u32 %v428, 16
        %v488 = vrot.slane %v486, 1
        %v489 = vsel %vm441, %v484, %v488
        %v491 = vshrl.u32 %v381, 16
        %v493 = vshll.u32 %v381, 16
        %v495 = vrot.slane %v493, 1
        %v496 = vor.u32 %v491, %v495
        %v498 = vshll.u32 %v429, 16
        %v500 = vrot.slane %v498, 1
        %v501 = vsel %vm441, %v496, %v500
        %v503 = vshrl.u32 %v382, 16
        %v505 = vshll.u32 %v382, 16
        %v507 = vrot.slane %v505, 1
        %v508 = vor.u32 %v503, %v507
        %v510 = vshll.u32 %v430, 16
        %v512 = vrot.slane %v510, 1
        %v513 = vsel %vm441, %v508, %v512
        %v515 = vshrl.u32 %v383, 16
        %v517 = vshll.u32 %v383, 16
        %v519 = vrot.slane %v517, 1
        %v520 = vor.u32 %v515, %v519
        %v522 = vshll.u32 %v431, 16
        %v524 = vrot.slane %v522, 1
        %v525 = vsel %vm441, %v520, %v524
        %v527 = vshrl.u32 %v384, 16
        %v529 = vshll.u32 %v384, 16
        %v531 = vrot.slane %v529, 1
        %v532 = vor.u32 %v527, %v531
        %v534 = vshll.u32 %v432, 16
        %v536 = vrot.slane %v534, 1
        %v537 = vsel %vm441, %v532, %v536
        %v539 = vshrl.u32 %v385, 16
        %v541 = vshll.u32 %v385, 16
        %v543 = vrot.slane %v541, 1
        %v544 = vor.u32 %v539, %v543
        %v546 = vshll.u32 %v433, 16
        %v548 = vrot.slane %v546, 1
        %v549 = vsel %vm441, %v544, %v548
        %v551 = vshrl.u32 %v386, 16
        %v553 = vshll.u32 %v386, 16
        %v555 = vrot.slane %v553, 1
        %v556 = vor.u32 %v551, %v555
        %v558 = vshll.u32 %v434, 16
        %v560 = vrot.slane %v558, 1
        %v561 = vsel %vm441, %v556, %v560
        %v563 = vshrl.u32 %v387, 16
        %v565 = vshll.u32 %v387, 16
        %v567 = vrot.slane %v565, 1
        %v568 = vor.u32 %v563, %v567
        %v570 = vshll.u32 %v435, 16
        %v572 = vrot.slane %v570, 1
        %v573 = vsel %vm441, %v568, %v572
        %v575 = vshrl.u32 %v388, 16
        %v577 = vshll.u32 %v388, 16
        %v579 = vrot.slane %v577, 1
        %v580 = vor.u32 %v575, %v579
        %v582 = vshll.u32 %v436, 16
        %v584 = vrot.slane %v582, 1
        %v585 = vsel %vm441, %v580, %v584
        %v587 = vshrl.u32 %v389, 16
        %v589 = vshll.u32 %v389, 16
        %v591 = vrot.slane %v589, 1
        %v592 = vor.u32 %v587, %v591
        %v594 = vshll.u32 %v437, 16
        %v596 = vrot.slane %v594, 1
        %v597 = vsel %vm441, %v592, %v596
        %v599 = vshrl.u32 %v390, 16
        %v601 = vshll.u32 %v390, 16
        %v603 = vrot.slane %v601, 1
        %v604 = vor.u32 %v599, %v603
        %v606 = vshll.u32 %v438, 16
        %v608 = vrot.slane %v606, 1
        %v609 = vsel %vm441, %v604, %v608
        %v611 = vshrl.u32 %v391, 16
        %v613 = vshll.u32 %v391, 16
        %v615 = vrot.slane %v613, 1
        %v616 = vor.u32 %v611, %v615
        %v618 = vshll.u32 %v439, 16
        %v620 = vrot.slane %v618, 1
        %v621 = vsel %vm441, %v616, %v620
        %v623 = vshrl.u32 %v392, 16
        %v625 = vshll.u32 %v392, 16
        %v627 = vrot.slane %v625, 1
        %v628 = vor.u32 %v623, %v627
        %v630 = vshll.u32 %v440, 16
        %v632 = vrot.slane %v630, 1
        %v633 = vsel %vm441, %v628, %v632
        %634 = vrot.lane.b32.xlu0 %v453, 4
        %v635 = vpop.permute.xlu0 %634
        %636 = vrot.lane.b32.xlu0 %v465, 4
        %v637 = vpop.permute.xlu0 %636
        %638 = vrot.lane.b32.xlu0 %v477, 4
        %v639 = vpop.permute.xlu0 %638
        %640 = vrot.lane.b32.xlu0 %v489, 4
        %v641 = vpop.permute.xlu0 %640
        %642 = vrot.lane.b32.xlu0 %v501, 4
        %v643 = vpop.permute.xlu0 %642
        %644 = vrot.lane.b32.xlu0 %v513, 4
        %v645 = vpop.permute.xlu0 %644
        %646 = vrot.lane.b32.xlu0 %v525, 4
        %v647 = vpop.permute.xlu0 %646
        %648 = vrot.lane.b32.xlu0 %v537, 4
        %v649 = vpop.permute.xlu0 %648
        %650 = vrot.lane.b32.xlu0 %v549, 4
        %v651 = vpop.permute.xlu0 %650
        %652 = vrot.lane.b32.xlu0 %v561, 4
        %v653 = vpop.permute.xlu0 %652
        %654 = vrot.lane.b32.xlu0 %v573, 4
        %v655 = vpop.permute.xlu0 %654
        %656 = vrot.lane.b32.xlu0 %v585, 4
        %v657 = vpop.permute.xlu0 %656
        %658 = vrot.lane.b32.xlu0 %v597, 4
        %v659 = vpop.permute.xlu0 %658
        %660 = vrot.lane.b32.xlu0 %v609, 4
        %v661 = vpop.permute.xlu0 %660
        %662 = vrot.lane.b32.xlu0 %v621, 4
        %v663 = vpop.permute.xlu0 %662
        %664 = vrot.lane.b32.xlu0 %v633, 4
        %v665 = vpop.permute.xlu0 %664
        %vm666 = vcmask 1046528
        %v667 = vrot.slane %v377, 1
        %v668 = vrot.slane %v425, 1
        %v669 = vsel %vm666, %v667, %v668
        %v670 = vrot.slane %v378, 1
        %v671 = vrot.slane %v426, 1
        %v672 = vsel %vm666, %v670, %v671
        %v673 = vrot.slane %v379, 1
        %v674 = vrot.slane %v427, 1
        %v675 = vsel %vm666, %v673, %v674
        %v676 = vrot.slane %v380, 1
        %v677 = vrot.slane %v428, 1
        %v678 = vsel %vm666, %v676, %v677
        %v679 = vrot.slane %v381, 1
        %v680 = vrot.slane %v429, 1
        %v681 = vsel %vm666, %v679, %v680
        %v682 = vrot.slane %v382, 1
        %v683 = vrot.slane %v430, 1
        %v684 = vsel %vm666, %v682, %v683
        %v685 = vrot.slane %v383, 1
        %v686 = vrot.slane %v431, 1
        %v687 = vsel %vm666, %v685, %v686
        %v688 = vrot.slane %v384, 1
        %v689 = vrot.slane %v432, 1
        %v690 = vsel %vm666, %v688, %v689
        %v691 = vrot.slane %v385, 1
        %v692 = vrot.slane %v433, 1
        %v693 = vsel %vm666, %v691, %v692
        %v694 = vrot.slane %v386, 1
        %v695 = vrot.slane %v434, 1
        %v696 = vsel %vm666, %v694, %v695
        %v697 = vrot.slane %v387, 1
        %v698 = vrot.slane %v435, 1
        %v699 = vsel %vm666, %v697, %v698
        %v700 = vrot.slane %v388, 1
        %v701 = vrot.slane %v436, 1
        %v702 = vsel %vm666, %v700, %v701
        %v703 = vrot.slane %v389, 1
        %v704 = vrot.slane %v437, 1
        %v705 = vsel %vm666, %v703, %v704
        %v706 = vrot.slane %v390, 1
        %v707 = vrot.slane %v438, 1
        %v708 = vsel %vm666, %v706, %v707
        %v709 = vrot.slane %v391, 1
        %v710 = vrot.slane %v439, 1
        %v711 = vsel %vm666, %v709, %v710
        %v712 = vrot.slane %v392, 1
        %v713 = vrot.slane %v440, 1
        %v714 = vsel %vm666, %v712, %v713
        %715 = vrot.lane.b32.xlu0 %v669, 8
        %v716 = vpop.permute.xlu0 %715
        %717 = vrot.lane.b32.xlu0 %v672, 8
        %v718 = vpop.permute.xlu0 %717
        %719 = vrot.lane.b32.xlu0 %v675, 8
        %v720 = vpop.permute.xlu0 %719
        %721 = vrot.lane.b32.xlu0 %v678, 8
        %v722 = vpop.permute.xlu0 %721
        %723 = vrot.lane.b32.xlu0 %v681, 8
        %v724 = vpop.permute.xlu0 %723
        %725 = vrot.lane.b32.xlu0 %v684, 8
        %v726 = vpop.permute.xlu0 %725
        %727 = vrot.lane.b32.xlu0 %v687, 8
        %v728 = vpop.permute.xlu0 %727
        %729 = vrot.lane.b32.xlu0 %v690, 8
        %v730 = vpop.permute.xlu0 %729
        %731 = vrot.lane.b32.xlu0 %v693, 8
        %v732 = vpop.permute.xlu0 %731
        %733 = vrot.lane.b32.xlu0 %v696, 8
        %v734 = vpop.permute.xlu0 %733
        %735 = vrot.lane.b32.xlu0 %v699, 8
        %v736 = vpop.permute.xlu0 %735
        %737 = vrot.lane.b32.xlu0 %v702, 8
        %v738 = vpop.permute.xlu0 %737
        %739 = vrot.lane.b32.xlu0 %v705, 8
        %v740 = vpop.permute.xlu0 %739
        %741 = vrot.lane.b32.xlu0 %v708, 8
        %v742 = vpop.permute.xlu0 %741
        %743 = vrot.lane.b32.xlu0 %v711, 8
        %v744 = vpop.permute.xlu0 %743
        %745 = vrot.lane.b32.xlu0 %v714, 8
        %v746 = vpop.permute.xlu0 %745
        %v749 = vunpack.c.l.b16 %v307
        %v750 = vunpack.c.l.b16 %v308
        %v751 = vpack.c.b16 %v750, %v749
        %752 = vrot.lane.b32.xlu0 %v378, 12
        %v753 = vpop.permute.xlu0 %752
        %754 = vrot.lane.b32.xlu0 %v379, 12
        %v755 = vpop.permute.xlu0 %754
        %756 = vrot.lane.b32.xlu0 %v380, 12
        %v757 = vpop.permute.xlu0 %756
        %758 = vrot.lane.b32.xlu0 %v381, 12
        %v759 = vpop.permute.xlu0 %758
        %760 = vrot.lane.b32.xlu0 %v382, 12
        %v761 = vpop.permute.xlu0 %760
        %762 = vrot.lane.b32.xlu0 %v383, 12
        %v763 = vpop.permute.xlu0 %762
        %764 = vrot.lane.b32.xlu0 %v384, 12
        %v765 = vpop.permute.xlu0 %764
        %766 = vrot.lane.b32.xlu0 %v385, 12
        %v767 = vpop.permute.xlu0 %766
        %768 = vrot.lane.b32.xlu0 %v386, 12
        %v769 = vpop.permute.xlu0 %768
        %770 = vrot.lane.b32.xlu0 %v387, 12
        %v771 = vpop.permute.xlu0 %770
        %772 = vrot.lane.b32.xlu0 %v388, 12
        %v773 = vpop.permute.xlu0 %772
        %774 = vrot.lane.b32.xlu0 %v389, 12
        %v775 = vpop.permute.xlu0 %774
        %776 = vrot.lane.b32.xlu0 %v390, 12
        %v777 = vpop.permute.xlu0 %776
        %778 = vrot.lane.b32.xlu0 %v391, 12
        %v779 = vpop.permute.xlu0 %778
        %780 = vrot.lane.b32.xlu0 %v392, 12
        %v781 = vpop.permute.xlu0 %780
        %782 = vrot.lane.b32.xlu0 %v751, 12
        %v783 = vpop.permute.xlu0 %782
        %v785 = vunpack.c.l.b16 %v309
        %v786 = vpack.c.b16 %v785, %v785
        %v788 = vshrl.u32 %v751, 16
        %v790 = vshll.u32 %v751, 16
        %v792 = vrot.slane %v790, 1
        %v793 = vor.u32 %v788, %v792
        %v795 = vshll.u32 %v786, 16
        %v797 = vrot.slane %v795, 1
        %v798 = vsel %vm441, %v793, %v797
        %799 = vrot.lane.b32.xlu0 %v465, 16
        %v800 = vpop.permute.xlu0 %799
        %801 = vrot.lane.b32.xlu0 %v477, 16
        %v802 = vpop.permute.xlu0 %801
        %803 = vrot.lane.b32.xlu0 %v489, 16
        %v804 = vpop.permute.xlu0 %803
        %805 = vrot.lane.b32.xlu0 %v501, 16
        %v806 = vpop.permute.xlu0 %805
        %807 = vrot.lane.b32.xlu0 %v513, 16
        %v808 = vpop.permute.xlu0 %807
        %809 = vrot.lane.b32.xlu0 %v525, 16
        %v810 = vpop.permute.xlu0 %809
        %811 = vrot.lane.b32.xlu0 %v537, 16
        %v812 = vpop.permute.xlu0 %811
        %813 = vrot.lane.b32.xlu0 %v549, 16
        %v814 = vpop.permute.xlu0 %813
        %815 = vrot.lane.b32.xlu0 %v561, 16
        %v816 = vpop.permute.xlu0 %815
        %817 = vrot.lane.b32.xlu0 %v573, 16
        %v818 = vpop.permute.xlu0 %817
        %819 = vrot.lane.b32.xlu0 %v585, 16
        %v820 = vpop.permute.xlu0 %819
        %821 = vrot.lane.b32.xlu0 %v597, 16
        %v822 = vpop.permute.xlu0 %821
        %823 = vrot.lane.b32.xlu0 %v609, 16
        %v824 = vpop.permute.xlu0 %823
        %825 = vrot.lane.b32.xlu0 %v621, 16
        %v826 = vpop.permute.xlu0 %825
        %827 = vrot.lane.b32.xlu0 %v633, 16
        %v828 = vpop.permute.xlu0 %827
        %829 = vrot.lane.b32.xlu0 %v798, 16
        %v830 = vpop.permute.xlu0 %829
        %v831 = vrot.slane %v751, 1
        %v832 = vrot.slane %v786, 1
        %v833 = vsel %vm666, %v831, %v832
        %834 = vrot.lane.b32.xlu0 %v672, 20
        %v835 = vpop.permute.xlu0 %834
        %836 = vrot.lane.b32.xlu0 %v675, 20
        %v837 = vpop.permute.xlu0 %836
        %838 = vrot.lane.b32.xlu0 %v678, 20
        %v839 = vpop.permute.xlu0 %838
        %840 = vrot.lane.b32.xlu0 %v681, 20
        %v841 = vpop.permute.xlu0 %840
        %842 = vrot.lane.b32.xlu0 %v684, 20
        %v843 = vpop.permute.xlu0 %842
        %844 = vrot.lane.b32.xlu0 %v687, 20
        %v845 = vpop.permute.xlu0 %844
        %846 = vrot.lane.b32.xlu0 %v690, 20
        %v847 = vpop.permute.xlu0 %846
        %848 = vrot.lane.b32.xlu0 %v693, 20
        %v849 = vpop.permute.xlu0 %848
        %850 = vrot.lane.b32.xlu0 %v696, 20
        %v851 = vpop.permute.xlu0 %850
        %852 = vrot.lane.b32.xlu0 %v699, 20
        %v853 = vpop.permute.xlu0 %852
        %854 = vrot.lane.b32.xlu0 %v702, 20
        %v855 = vpop.permute.xlu0 %854
        %856 = vrot.lane.b32.xlu0 %v705, 20
        %v857 = vpop.permute.xlu0 %856
        %858 = vrot.lane.b32.xlu0 %v708, 20
        %v859 = vpop.permute.xlu0 %858
        %860 = vrot.lane.b32.xlu0 %v711, 20
        %v861 = vpop.permute.xlu0 %860
        %862 = vrot.lane.b32.xlu0 %v714, 20
        %v863 = vpop.permute.xlu0 %862
        %864 = vrot.lane.b32.xlu0 %v833, 20
        %v865 = vpop.permute.xlu0 %864
        %v868 = vunpack.c.l.b16 %v310
        %v869 = vunpack.c.l.b16 %v311
        %v870 = vpack.c.b16 %v869, %v868
        %871 = vrot.lane.b32.xlu0 %v379, 24
        %v872 = vpop.permute.xlu0 %871
        %873 = vrot.lane.b32.xlu0 %v380, 24
        %v874 = vpop.permute.xlu0 %873
        %875 = vrot.lane.b32.xlu0 %v381, 24
        %v876 = vpop.permute.xlu0 %875
        %877 = vrot.lane.b32.xlu0 %v382, 24
        %v878 = vpop.permute.xlu0 %877
        %879 = vrot.lane.b32.xlu0 %v383, 24
        %v880 = vpop.permute.xlu0 %879
        %881 = vrot.lane.b32.xlu0 %v384, 24
        %v882 = vpop.permute.xlu0 %881
        %883 = vrot.lane.b32.xlu0 %v385, 24
        %v884 = vpop.permute.xlu0 %883
        %885 = vrot.lane.b32.xlu0 %v386, 24
        %v886 = vpop.permute.xlu0 %885
        %887 = vrot.lane.b32.xlu0 %v387, 24
        %v888 = vpop.permute.xlu0 %887
        %889 = vrot.lane.b32.xlu0 %v388, 24
        %v890 = vpop.permute.xlu0 %889
        %891 = vrot.lane.b32.xlu0 %v389, 24
        %v892 = vpop.permute.xlu0 %891
        %893 = vrot.lane.b32.xlu0 %v390, 24
        %v894 = vpop.permute.xlu0 %893
        %895 = vrot.lane.b32.xlu0 %v391, 24
        %v896 = vpop.permute.xlu0 %895
        %897 = vrot.lane.b32.xlu0 %v392, 24
        %v898 = vpop.permute.xlu0 %897
        %899 = vrot.lane.b32.xlu0 %v751, 24
        %v900 = vpop.permute.xlu0 %899
        %901 = vrot.lane.b32.xlu0 %v870, 24
        %v902 = vpop.permute.xlu0 %901
        %v904 = vunpack.c.l.b16 %v312
        %v905 = vpack.c.b16 %v904, %v904
        %v907 = vshrl.u32 %v870, 16
        %v909 = vshll.u32 %v870, 16
        %v911 = vrot.slane %v909, 1
        %v912 = vor.u32 %v907, %v911
        %v914 = vshll.u32 %v905, 16
        %v916 = vrot.slane %v914, 1
        %v917 = vsel %vm441, %v912, %v916
        %918 = vrot.lane.b32.xlu0 %v477, 28
        %v919 = vpop.permute.xlu0 %918
        %920 = vrot.lane.b32.xlu0 %v489, 28
        %v921 = vpop.permute.xlu0 %920
        %922 = vrot.lane.b32.xlu0 %v501, 28
        %v923 = vpop.permute.xlu0 %922
        %924 = vrot.lane.b32.xlu0 %v513, 28
        %v925 = vpop.permute.xlu0 %924
        %926 = vrot.lane.b32.xlu0 %v525, 28
        %v927 = vpop.permute.xlu0 %926
        %928 = vrot.lane.b32.xlu0 %v537, 28
        %v929 = vpop.permute.xlu0 %928
        %930 = vrot.lane.b32.xlu0 %v549, 28
        %v931 = vpop.permute.xlu0 %930
        %932 = vrot.lane.b32.xlu0 %v561, 28
        %v933 = vpop.permute.xlu0 %932
        %934 = vrot.lane.b32.xlu0 %v573, 28
        %v935 = vpop.permute.xlu0 %934
        %936 = vrot.lane.b32.xlu0 %v585, 28
        %v937 = vpop.permute.xlu0 %936
        %938 = vrot.lane.b32.xlu0 %v597, 28
        %v939 = vpop.permute.xlu0 %938
        %940 = vrot.lane.b32.xlu0 %v609, 28
        %v941 = vpop.permute.xlu0 %940
        %942 = vrot.lane.b32.xlu0 %v621, 28
        %v943 = vpop.permute.xlu0 %942
        %944 = vrot.lane.b32.xlu0 %v633, 28
        %v945 = vpop.permute.xlu0 %944
        %946 = vrot.lane.b32.xlu0 %v798, 28
        %v947 = vpop.permute.xlu0 %946
        %948 = vrot.lane.b32.xlu0 %v917, 28
        %v949 = vpop.permute.xlu0 %948
        %v950 = vrot.slane %v870, 1
        %v951 = vrot.slane %v905, 1
        %v952 = vsel %vm666, %v950, %v951
        %953 = vrot.lane.b32.xlu0 %v675, 32
        %v954 = vpop.permute.xlu0 %953
        %955 = vrot.lane.b32.xlu0 %v678, 32
        %v956 = vpop.permute.xlu0 %955
        %957 = vrot.lane.b32.xlu0 %v681, 32
        %v958 = vpop.permute.xlu0 %957
        %959 = vrot.lane.b32.xlu0 %v684, 32
        %v960 = vpop.permute.xlu0 %959
        %961 = vrot.lane.b32.xlu0 %v687, 32
        %v962 = vpop.permute.xlu0 %961
        %963 = vrot.lane.b32.xlu0 %v690, 32
        %v964 = vpop.permute.xlu0 %963
        %965 = vrot.lane.b32.xlu0 %v693, 32
        %v966 = vpop.permute.xlu0 %965
        %967 = vrot.lane.b32.xlu0 %v696, 32
        %v968 = vpop.permute.xlu0 %967
        %969 = vrot.lane.b32.xlu0 %v699, 32
        %v970 = vpop.permute.xlu0 %969
        %971 = vrot.lane.b32.xlu0 %v702, 32
        %v972 = vpop.permute.xlu0 %971
        %973 = vrot.lane.b32.xlu0 %v705, 32
        %v974 = vpop.permute.xlu0 %973
        %975 = vrot.lane.b32.xlu0 %v708, 32
        %v976 = vpop.permute.xlu0 %975
        %977 = vrot.lane.b32.xlu0 %v711, 32
        %v978 = vpop.permute.xlu0 %977
        %979 = vrot.lane.b32.xlu0 %v714, 32
        %v980 = vpop.permute.xlu0 %979
        %981 = vrot.lane.b32.xlu0 %v833, 32
        %v982 = vpop.permute.xlu0 %981
        %983 = vrot.lane.b32.xlu0 %v952, 32
        %v984 = vpop.permute.xlu0 %983
        %vm985 = vcmask 31744
        %v987 = vsel %vm985, %v377, %v635
        %v989 = vsel %vm985, %v378, %v637
        %v991 = vsel %vm985, %v379, %v639
        %v993 = vsel %vm985, %v380, %v641
        %v995 = vsel %vm985, %v381, %v643
        %v997 = vsel %vm985, %v382, %v645
        %v999 = vsel %vm985, %v383, %v647
        %v1001 = vsel %vm985, %v384, %v649
        %v1003 = vsel %vm985, %v385, %v651
        %v1005 = vsel %vm985, %v386, %v653
        %v1007 = vsel %vm985, %v387, %v655
        %v1009 = vsel %vm985, %v388, %v657
        %v1011 = vsel %vm985, %v389, %v659
        %v1013 = vsel %vm985, %v390, %v661
        %v1015 = vsel %vm985, %v391, %v663
        %v1017 = vsel %vm985, %v392, %v665
        %vm1018 = vcmask 64512
        %v1020 = vsel %vm1018, %v987, %v716
        %v1022 = vsel %vm1018, %v989, %v718
        %v1024 = vsel %vm1018, %v991, %v720
        %v1026 = vsel %vm1018, %v993, %v722
        %v1028 = vsel %vm1018, %v995, %v724
        %v1030 = vsel %vm1018, %v997, %v726
        %v1032 = vsel %vm1018, %v999, %v728
        %v1034 = vsel %vm1018, %v1001, %v730
        %v1036 = vsel %vm1018, %v1003, %v732
        %v1038 = vsel %vm1018, %v1005, %v734
        %v1040 = vsel %vm1018, %v1007, %v736
        %v1042 = vsel %vm1018, %v1009, %v738
        %v1044 = vsel %vm1018, %v1011, %v740
        %v1046 = vsel %vm1018, %v1013, %v742
        %v1048 = vsel %vm1018, %v1015, %v744
        %v1050 = vsel %vm1018, %v1017, %v746
        %vm1051 = vcmask 97280
        %v1053 = vsel %vm1051, %v1020, %v753
        %v1055 = vsel %vm1051, %v1022, %v755
        %v1057 = vsel %vm1051, %v1024, %v757
        %v1059 = vsel %vm1051, %v1026, %v759
        %v1061 = vsel %vm1051, %v1028, %v761
        %v1063 = vsel %vm1051, %v1030, %v763
        %v1065 = vsel %vm1051, %v1032, %v765
        %v1067 = vsel %vm1051, %v1034, %v767
        %v1069 = vsel %vm1051, %v1036, %v769
        %v1071 = vsel %vm1051, %v1038, %v771
        %v1073 = vsel %vm1051, %v1040, %v773
        %v1075 = vsel %vm1051, %v1042, %v775
        %v1077 = vsel %vm1051, %v1044, %v777
        %v1079 = vsel %vm1051, %v1046, %v779
        %v1081 = vsel %vm1051, %v1048, %v781
        %v1083 = vsel %vm1051, %v1050, %v783
        %vm1084 = vcmask 130048
        %v1086 = vsel %vm1084, %v1053, %v800
        %v1088 = vsel %vm1084, %v1055, %v802
        %v1090 = vsel %vm1084, %v1057, %v804
        %v1092 = vsel %vm1084, %v1059, %v806
        %v1094 = vsel %vm1084, %v1061, %v808
        %v1096 = vsel %vm1084, %v1063, %v810
        %v1098 = vsel %vm1084, %v1065, %v812
        %v1100 = vsel %vm1084, %v1067, %v814
        %v1102 = vsel %vm1084, %v1069, %v816
        %v1104 = vsel %vm1084, %v1071, %v818
        %v1106 = vsel %vm1084, %v1073, %v820
        %v1108 = vsel %vm1084, %v1075, %v822
        %v1110 = vsel %vm1084, %v1077, %v824
        %v1112 = vsel %vm1084, %v1079, %v826
        %v1114 = vsel %vm1084, %v1081, %v828
        %v1116 = vsel %vm1084, %v1083, %v830
        %vm1117 = vcmask 162816
        %v1119 = vsel %vm1117, %v1086, %v835
        %v1121 = vsel %vm1117, %v1088, %v837
        %v1123 = vsel %vm1117, %v1090, %v839
        %v1125 = vsel %vm1117, %v1092, %v841
        %v1127 = vsel %vm1117, %v1094, %v843
        %v1129 = vsel %vm1117, %v1096, %v845
        %v1131 = vsel %vm1117, %v1098, %v847
        %v1133 = vsel %vm1117, %v1100, %v849
        %v1135 = vsel %vm1117, %v1102, %v851
        %v1137 = vsel %vm1117, %v1104, %v853
        %v1139 = vsel %vm1117, %v1106, %v855
        %v1141 = vsel %vm1117, %v1108, %v857
        %v1143 = vsel %vm1117, %v1110, %v859
        %v1145 = vsel %vm1117, %v1112, %v861
        %v1147 = vsel %vm1117, %v1114, %v863
        %v1149 = vsel %vm1117, %v1116, %v865
        %vm1150 = vcmask 195584
        %v1152 = vsel %vm1150, %v1119, %v872
        %v1154 = vsel %vm1150, %v1121, %v874
        %v1156 = vsel %vm1150, %v1123, %v876
        %v1158 = vsel %vm1150, %v1125, %v878
        %v1160 = vsel %vm1150, %v1127, %v880
        %v1162 = vsel %vm1150, %v1129, %v882
        %v1164 = vsel %vm1150, %v1131, %v884
        %v1166 = vsel %vm1150, %v1133, %v886
        %v1168 = vsel %vm1150, %v1135, %v888
        %v1170 = vsel %vm1150, %v1137, %v890
        %v1172 = vsel %vm1150, %v1139, %v892
        %v1174 = vsel %vm1150, %v1141, %v894
        %v1176 = vsel %vm1150, %v1143, %v896
        %v1178 = vsel %vm1150, %v1145, %v898
        %v1180 = vsel %vm1150, %v1147, %v900
        %v1182 = vsel %vm1150, %v1149, %v902
        %vm1183 = vcmask 228352
        %v1185 = vsel %vm1183, %v1152, %v919
        %v1187 = vsel %vm1183, %v1154, %v921
        %v1189 = vsel %vm1183, %v1156, %v923
        %v1191 = vsel %vm1183, %v1158, %v925
        %v1193 = vsel %vm1183, %v1160, %v927
        %v1195 = vsel %vm1183, %v1162, %v929
        %v1197 = vsel %vm1183, %v1164, %v931
        %v1199 = vsel %vm1183, %v1166, %v933
        %v1201 = vsel %vm1183, %v1168, %v935
        %v1203 = vsel %vm1183, %v1170, %v937
        %v1205 = vsel %vm1183, %v1172, %v939
        %v1207 = vsel %vm1183, %v1174, %v941
        %v1209 = vsel %vm1183, %v1176, %v943
        %v1211 = vsel %vm1183, %v1178, %v945
        %v1213 = vsel %vm1183, %v1180, %v947
        %v1215 = vsel %vm1183, %v1182, %v949
        %vm1216 = vcmask 261120
        %v1218 = vsel %vm1216, %v1185, %v954
        %v1220 = vsel %vm1216, %v1187, %v956
        %v1222 = vsel %vm1216, %v1189, %v958
        %v1224 = vsel %vm1216, %v1191, %v960
        %v1226 = vsel %vm1216, %v1193, %v962
        %v1228 = vsel %vm1216, %v1195, %v964
        %v1230 = vsel %vm1216, %v1197, %v966
        %v1232 = vsel %vm1216, %v1199, %v968
        %v1234 = vsel %vm1216, %v1201, %v970
        %v1236 = vsel %vm1216, %v1203, %v972
        %v1238 = vsel %vm1216, %v1205, %v974
        %v1240 = vsel %vm1216, %v1207, %v976
        %v1242 = vsel %vm1216, %v1209, %v978
        %v1244 = vsel %vm1216, %v1211, %v980
        %v1246 = vsel %vm1216, %v1213, %v982
        %v1248 = vsel %vm1216, %v1215, %v984
        %v1249 = vld [vmem:[#allocation5] sm:$0xf]
        %v1250 = vld [vmem:[#allocation5 + $0x4] sm:$0xf]
        %v1251 = vld [vmem:[#allocation5 + $0x8] sm:$0xf]
        %v1252 = vld [vmem:[#allocation5 + $0xc] sm:$0xf]
        %v1253 = vld [vmem:[#allocation5 + $0x10] sm:$0x3]
        %v1259 = vunpack.c.l.b16 %v1249
        %v1260 = vunpack.c.l.b16 %v1250
        %v1261 = vunpack.c.l.b16 %v1251
        %v1262 = vunpack.c.l.b16 %v1252
        %v1263 = vunpack.c.l.b16 %v1253
        %v1264 = vpack.c.b16 %v1260, %v1259
        %v1265 = vpack.c.b16 %v1262, %v1261
        %v1266 = vpack.c.b16 %v1263, %v1263
        %vm1269 = vcmask 293888
        %v1270 = vsel %vm1269, %v1218, 0
        %v1272 = vsel %vm1269, %v1220, 0
        %v1274 = vsel %vm1269, %v1222, 0
        %v1276 = vsel %vm1269, %v1224, 0
        %v1278 = vsel %vm1269, %v1226, 0
        %v1280 = vsel %vm1269, %v1228, 0
        %v1282 = vsel %vm1269, %v1230, 0
        %v1284 = vsel %vm1269, %v1232, 0
        %v1286 = vsel %vm1269, %v1234, 0
        %v1288 = vsel %vm1269, %v1236, 0
        %v1290 = vsel %vm1269, %v1238, 0
        %v1292 = vsel %vm1269, %v1240, 0
        %v1294 = vsel %vm1269, %v1242, 0
        %v1296 = vsel %vm1269, %v1244, 0
        %v1298 = vsel %vm1269, %v1246, 0
        %v1300 = vsel %vm1269, %v1248, 0
        %vm1302 = vcmask 1041408
        %v1304 = vsel %vm1302, %v1266, 0
        %1306 = vmatprep.subr.bf16.mxu0 0
        %1307 = vmatpush1.bf16.msra.mxu0 %v1264
        %1308 = vmatprep.subr.bf16.mxu0 0
        %1309 = vmatpush1.bf16.msra.mxu0 %v1265
        %1310 = vmatprep.subr.bf16.mxu0 0
        %1311 = vmatpush1.bf16.msra.mxu0 %v1304
        %1312 = vmatprep.subr.bf16.mxu0 0
        %1313 = vmatpush1.bf16.msra.mxu0 0
        %1314 = vmatprep.subr.bf16.mxu0 0
        %1315 = vmatpush1.bf16.msra.mxu0 0
        %1316 = vmatprep.subr.bf16.mxu0 0
        %1317 = vmatpush1.bf16.msra.mxu0 0
        %1318 = vmatprep.subr.bf16.mxu0 0
        %1319 = vmatpush1.bf16.msra.mxu0 0
        %1320 = vmatprep.subr.bf16.mxu0 0
        %1321 = vmatpush1.bf16.msra.mxu0 0
        %1322 = vmatprep.subr.bf16.mxu0 0
        %1323 = vmatpush1.bf16.msra.mxu0 0
        %1324 = vmatprep.subr.bf16.mxu0 0
        %1325 = vmatpush1.bf16.msra.mxu0 0
        %1326 = vmatprep.subr.bf16.mxu0 0
        %1327 = vmatpush1.bf16.msra.mxu0 0
        %1328 = vmatprep.subr.bf16.mxu0 0
        %1329 = vmatpush1.bf16.msra.mxu0 0
        %1330 = vmatprep.subr.bf16.mxu0 0
        %1331 = vmatpush1.bf16.msra.mxu0 0
        %1332 = vmatprep.subr.bf16.mxu0 0
        %1333 = vmatpush1.bf16.msra.mxu0 0
        %1334 = vmatprep.subr.bf16.mxu0 0
        %1335 = vmatpush1.bf16.msra.mxu0 0
        %1336 = vmatprep.subr.bf16.mxu0 0
        %1337 = vmatpush1.bf16.msra.mxu0 0
        %1338 = vmatprep.mubr.bf16.mxu0 0
        %1339 = vmatmul.mubr.bf16.gmra.mrb[0].mxu0 %v1270
        %v1340 = vpop.f32.mrb[0].mxu0
        %v1341 = vadd.f32 0.0, %v1340
        %v1342 = vpop.f32.mrb[0].mxu0
        %v1343 = vpop.f32.mrb[0].mxu0
        %v1344 = vadd.f32 0.0, %v1343
        %v1345 = vpop.f32.mrb[0].mxu0
        %1346 = vmatprep.mubr.bf16.mxu0 0
        %1347 = vmatmul.mubr.bf16.gmra.mrb[0].mxu0 %v1272
        %v1348 = vpop.f32.mrb[0].mxu0
        %v1349 = vadd.f32 0.0, %v1348
        %v1350 = vpop.f32.mrb[0].mxu0
        %v1351 = vpop.f32.mrb[0].mxu0
        %v1352 = vadd.f32 0.0, %v1351
        %v1353 = vpop.f32.mrb[0].mxu0
        %1354 = vmatprep.mubr.bf16.mxu0 0
        %1355 = vmatmul.mubr.bf16.gmra.mrb[0].mxu0 %v1274
        %v1356 = vpop.f32.mrb[0].mxu0
        %v1357 = vadd.f32 0.0, %v1356
        %v1358 = vpop.f32.mrb[0].mxu0
        %v1359 = vpop.f32.mrb[0].mxu0
        %v1360 = vadd.f32 0.0, %v1359
        %v1361 = vpop.f32.mrb[0].mxu0
        %1362 = vmatprep.mubr.bf16.mxu0 0
        %1363 = vmatmul.mubr.bf16.gmra.mrb[0].mxu0 %v1276
        %v1364 = vpop.f32.mrb[0].mxu0
        %v1365 = vadd.f32 0.0, %v1364
        %v1366 = vpop.f32.mrb[0].mxu0
        %v1367 = vpop.f32.mrb[0].mxu0
        %v1368 = vadd.f32 0.0, %v1367
        %v1369 = vpop.f32.mrb[0].mxu0
        %1370 = vmatprep.mubr.bf16.mxu0 0
        %1371 = vmatmul.mubr.bf16.gmra.mrb[0].mxu0 %v1278
        %v1372 = vpop.f32.mrb[0].mxu0
        %v1373 = vadd.f32 0.0, %v1372
        %v1374 = vpop.f32.mrb[0].mxu0
        %v1375 = vpop.f32.mrb[0].mxu0
        %v1376 = vadd.f32 0.0, %v1375
        %v1377 = vpop.f32.mrb[0].mxu0
        %1378 = vmatprep.mubr.bf16.mxu0 0
        %1379 = vmatmul.mubr.bf16.gmra.mrb[0].mxu0 %v1280
        %v1380 = vpop.f32.mrb[0].mxu0
        %v1381 = vadd.f32 0.0, %v1380
        %v1382 = vpop.f32.mrb[0].mxu0
        %v1383 = vpop.f32.mrb[0].mxu0
        %v1384 = vadd.f32 0.0, %v1383
        %v1385 = vpop.f32.mrb[0].mxu0
        %1386 = vmatprep.mubr.bf16.mxu0 0
        %1387 = vmatmul.mubr.bf16.gmra.mrb[0].mxu0 %v1282
        %v1388 = vpop.f32.mrb[0].mxu0
        %v1389 = vadd.f32 0.0, %v1388
        %v1390 = vpop.f32.mrb[0].mxu0
        %v1391 = vpop.f32.mrb[0].mxu0
        %v1392 = vadd.f32 0.0, %v1391
        %v1393 = vpop.f32.mrb[0].mxu0
        %1394 = vmatprep.mubr.bf16.mxu0 0
        %1395 = vmatmul.mubr.bf16.gmra.mrb[0].mxu0 %v1284
        %v1396 = vpop.f32.mrb[0].mxu0
        %v1397 = vadd.f32 0.0, %v1396
        %v1398 = vpop.f32.mrb[0].mxu0
        %v1399 = vpop.f32.mrb[0].mxu0
        %v1400 = vadd.f32 0.0, %v1399
        %v1401 = vpop.f32.mrb[0].mxu0
        %1402 = vmatprep.mubr.bf16.mxu0 0
        %1403 = vmatmul.mubr.bf16.gmra.mrb[0].mxu0 %v1286
        %v1404 = vpop.f32.mrb[0].mxu0
        %v1405 = vadd.f32 0.0, %v1404
        %v1406 = vpop.f32.mrb[0].mxu0
        %v1407 = vpop.f32.mrb[0].mxu0
        %v1408 = vadd.f32 0.0, %v1407
        %v1409 = vpop.f32.mrb[0].mxu0
        %1410 = vmatprep.mubr.bf16.mxu0 0
        %1411 = vmatmul.mubr.bf16.gmra.mrb[0].mxu0 %v1288
        %v1412 = vpop.f32.mrb[0].mxu0
        %v1413 = vadd.f32 0.0, %v1412
        %v1414 = vpop.f32.mrb[0].mxu0
        %v1415 = vpop.f32.mrb[0].mxu0
        %v1416 = vadd.f32 0.0, %v1415
        %v1417 = vpop.f32.mrb[0].mxu0
        %1418 = vmatprep.mubr.bf16.mxu0 0
        %1419 = vmatmul.mubr.bf16.gmra.mrb[0].mxu0 %v1290
        %v1420 = vpop.f32.mrb[0].mxu0
        %v1421 = vadd.f32 0.0, %v1420
        %v1422 = vpop.f32.mrb[0].mxu0
        %v1423 = vpop.f32.mrb[0].mxu0
        %v1424 = vadd.f32 0.0, %v1423
        %v1425 = vpop.f32.mrb[0].mxu0
        %1426 = vmatprep.mubr.bf16.mxu0 0
        %1427 = vmatmul.mubr.bf16.gmra.mrb[0].mxu0 %v1292
        %v1428 = vpop.f32.mrb[0].mxu0
        %v1429 = vadd.f32 0.0, %v1428
        %v1430 = vpop.f32.mrb[0].mxu0
        %v1431 = vpop.f32.mrb[0].mxu0
        %v1432 = vadd.f32 0.0, %v1431
        %v1433 = vpop.f32.mrb[0].mxu0
        %1434 = vmatprep.mubr.bf16.mxu0 0
        %1435 = vmatmul.mubr.bf16.gmra.mrb[0].mxu0 %v1294
        %v1436 = vpop.f32.mrb[0].mxu0
        %v1437 = vadd.f32 0.0, %v1436
        %v1438 = vpop.f32.mrb[0].mxu0
        %v1439 = vpop.f32.mrb[0].mxu0
        %v1440 = vadd.f32 0.0, %v1439
        %v1441 = vpop.f32.mrb[0].mxu0
        %1442 = vmatprep.mubr.bf16.mxu0 0
        %1443 = vmatmul.mubr.bf16.gmra.mrb[0].mxu0 %v1296
        %v1444 = vpop.f32.mrb[0].mxu0
        %v1445 = vadd.f32 0.0, %v1444
        %v1446 = vpop.f32.mrb[0].mxu0
        %v1447 = vpop.f32.mrb[0].mxu0
        %v1448 = vadd.f32 0.0, %v1447
        %v1449 = vpop.f32.mrb[0].mxu0
        %1450 = vmatprep.mubr.bf16.mxu0 0
        %1451 = vmatmul.mubr.bf16.gmra.mrb[0].mxu0 %v1298
        %v1452 = vpop.f32.mrb[0].mxu0
        %v1453 = vadd.f32 0.0, %v1452
        %v1454 = vpop.f32.mrb[0].mxu0
        %v1455 = vpop.f32.mrb[0].mxu0
        %v1456 = vadd.f32 0.0, %v1455
        %v1457 = vpop.f32.mrb[0].mxu0
        %1458 = vmatprep.mubr.bf16.mxu0 0
        %1459 = vmatmul.mubr.bf16.gmra.mrb[0].mxu0 %v1300
        %v1460 = vpop.f32.mrb[0].mxu0
        %v1461 = vadd.f32 0.0, %v1460
        %v1462 = vpop.f32.mrb[0].mxu0
        %v1463 = vpop.f32.mrb[0].mxu0
        %v1464 = vadd.f32 0.0, %v1463
        %v1465 = vpop.f32.mrb[0].mxu0
        %1466 = vdwg.mxu0
        %v1467 = vld [vmem:[#allocation7] sm:$0x3]
        %v1468 = vlaneseq
        %v1469 = vshrl.u32 %v1468, 7
        %v1470 = vsub.s32 0, %v1469
        %v1471 = vrot.slane %v1467, %v1470
        %v1472 = vmul.f32 %v1341, %v1471
        %v1473 = vmul.f32 %v1344, %v1471
        %v1474 = vmul.f32 %v1349, %v1471
        %v1475 = vmul.f32 %v1352, %v1471
        %v1476 = vmul.f32 %v1357, %v1471
        %v1477 = vmul.f32 %v1360, %v1471
        %v1478 = vmul.f32 %v1365, %v1471
        %v1479 = vmul.f32 %v1368, %v1471
        %v1480 = vmul.f32 %v1373, %v1471
        %v1481 = vmul.f32 %v1376, %v1471
        %v1482 = vmul.f32 %v1381, %v1471
        %v1483 = vmul.f32 %v1384, %v1471
        %v1484 = vmul.f32 %v1389, %v1471
        %v1485 = vmul.f32 %v1392, %v1471
        %v1486 = vmul.f32 %v1397, %v1471
        %v1487 = vmul.f32 %v1400, %v1471
        %v1488 = vmul.f32 %v1405, %v1471
        %v1489 = vmul.f32 %v1408, %v1471
        %v1490 = vmul.f32 %v1413, %v1471
        %v1491 = vmul.f32 %v1416, %v1471
        %v1492 = vmul.f32 %v1421, %v1471
        %v1493 = vmul.f32 %v1424, %v1471
        %v1494 = vmul.f32 %v1429, %v1471
        %v1495 = vmul.f32 %v1432, %v1471
        %v1496 = vmul.f32 %v1437, %v1471
        %v1497 = vmul.f32 %v1440, %v1471
        %v1498 = vmul.f32 %v1445, %v1471
        %v1499 = vmul.f32 %v1448, %v1471
        %v1500 = vmul.f32 %v1453, %v1471
        %v1501 = vmul.f32 %v1456, %v1471
        %v1502 = vmul.f32 %v1461, %v1471
        %v1503 = vmul.f32 %v1464, %v1471
        %v1504 = vlaneseq
        %v1505 = vshrl.u32 %v1504, 7
        %v1506 = vsub.s32 1, %v1505
        %v1507 = vrot.slane %v1467, %v1506
        %v1508 = vadd.f32 %v1472, %v1507
        %v1509 = vadd.f32 %v1473, %v1507
        %v1510 = vadd.f32 %v1474, %v1507
        %v1511 = vadd.f32 %v1475, %v1507
        %v1512 = vadd.f32 %v1476, %v1507
        %v1513 = vadd.f32 %v1477, %v1507
        %v1514 = vadd.f32 %v1478, %v1507
        %v1515 = vadd.f32 %v1479, %v1507
        %v1516 = vadd.f32 %v1480, %v1507
        %v1517 = vadd.f32 %v1481, %v1507
        %v1518 = vadd.f32 %v1482, %v1507
        %v1519 = vadd.f32 %v1483, %v1507
        %v1520 = vadd.f32 %v1484, %v1507
        %v1521 = vadd.f32 %v1485, %v1507
        %v1522 = vadd.f32 %v1486, %v1507
        %v1523 = vadd.f32 %v1487, %v1507
        %v1524 = vadd.f32 %v1488, %v1507
        %v1525 = vadd.f32 %v1489, %v1507
        %v1526 = vadd.f32 %v1490, %v1507
        %v1527 = vadd.f32 %v1491, %v1507
        %v1528 = vadd.f32 %v1492, %v1507
        %v1529 = vadd.f32 %v1493, %v1507
        %v1530 = vadd.f32 %v1494, %v1507
        %v1531 = vadd.f32 %v1495, %v1507
        %v1532 = vadd.f32 %v1496, %v1507
        %v1533 = vadd.f32 %v1497, %v1507
        %v1534 = vadd.f32 %v1498, %v1507
        %v1535 = vadd.f32 %v1499, %v1507
        %v1536 = vadd.f32 %v1500, %v1507
        %v1537 = vadd.f32 %v1501, %v1507
        %v1538 = vadd.f32 %v1502, %v1507
        %v1539 = vadd.f32 %v1503, %v1507
        %1540 = vst [vmem:[%s252] sm:$0xff] %v1508
        %1541 = vst [vmem:[%s252 + $0x8] sm:$0xff] %v1509
        %1542 = vst [vmem:[%s252 + $0x10] sm:$0xff] %v1510
        %1543 = vst [vmem:[%s252 + $0x18] sm:$0xff] %v1511
        %1544 = vst [vmem:[%s252 + $0x20] sm:$0xff] %v1512
        %1545 = vst [vmem:[%s252 + $0x28] sm:$0xff] %v1513
        %1546 = vst [vmem:[%s252 + $0x30] sm:$0xff] %v1514
        %1547 = vst [vmem:[%s252 + $0x38] sm:$0xff] %v1515
        %1548 = vst [vmem:[%s252 + $0x40] sm:$0xff] %v1516
        %1549 = vst [vmem:[%s252 + $0x48] sm:$0xff] %v1517
        %1550 = vst [vmem:[%s252 + $0x50] sm:$0xff] %v1518
        %1551 = vst [vmem:[%s252 + $0x58] sm:$0xff] %v1519
        %1552 = vst [vmem:[%s252 + $0x60] sm:$0xff] %v1520
        %1553 = vst [vmem:[%s252 + $0x68] sm:$0xff] %v1521
        %1554 = vst [vmem:[%s252 + $0x70] sm:$0xff] %v1522
        %1555 = vst [vmem:[%s252 + $0x78] sm:$0xff] %v1523
        %1556 = vst [vmem:[%s252 + $0x80] sm:$0xff] %v1524
        %1557 = vst [vmem:[%s252 + $0x88] sm:$0xff] %v1525
        %1558 = vst [vmem:[%s252 + $0x90] sm:$0xff] %v1526
        %1559 = vst [vmem:[%s252 + $0x98] sm:$0xff] %v1527
        %1560 = vst [vmem:[%s252 + $0xa0] sm:$0xff] %v1528
        %1561 = vst [vmem:[%s252 + $0xa8] sm:$0xff] %v1529
        %1562 = vst [vmem:[%s252 + $0xb0] sm:$0xff] %v1530
        %1563 = vst [vmem:[%s252 + $0xb8] sm:$0xff] %v1531
        %1564 = vst [vmem:[%s252 + $0xc0] sm:$0xff] %v1532
        %1565 = vst [vmem:[%s252 + $0xc8] sm:$0xff] %v1533
        %1566 = vst [vmem:[%s252 + $0xd0] sm:$0xff] %v1534
        %1567 = vst [vmem:[%s252 + $0xd8] sm:$0xff] %v1535
        %1568 = vst [vmem:[%s252 + $0xe0] sm:$0xff] %v1536
        %1569 = vst [vmem:[%s252 + $0xe8] sm:$0xff] %v1537
        %1570 = vst [vmem:[%s252 + $0xf0] sm:$0xff] %v1538
        %1571 = vst [vmem:[%s252 + $0xf8] sm:$0xff] %v1539
        %s1572 = sand.u32 %s130, 1
        %s1573 = scalar_lea.sflag [#allocation4], %s1572
        %s1574 = sand.u32 %s130, 1
        %s1575 = smul.addr %s1574, 256
        %s1576 = scalar_lea.vmem [#allocation8], %s1575
        // Predicated region
        $region45: #{quan_conv2d.1} parent=31 // pred_check
          %p1577 = pneg %p140
        $region46: #{quan_conv2d.1} parent=31 // pred_check_branch
          %1579 = sbr.rel (%p1577) target = $region48
        $region47: #{quan_conv2d.1} parent=31 // pred_region
          %s1580 = smul.u32 16, %s28
          %s1582 = ssub.s32 4096, 4096
          %1583 = vsyncadd %s1573, %s1582
          %s1584 = smul.addr %s1580, 2
          %s1585 = sadd.s32 %s27, %s1584
          %s1586 = smul.addr %s26, 32
          %s1587 = sadd.s32 %s1585, %s1586
          %s1588 = smul.addr %s1587, 128
          %s1589 = scalar_lea.hbm %s3, %s1588
          %s1590 = sshll.u32 %s1576, 4
          %s1591 = int_to_ptr.vmem [resolvable:$true] %s1590
          %1596 = dma.vmem_to_hbm [thread:$0]  %s1591, 4096, %s1589, %s1573, 128, 128, 8
        $region48: #{quan_conv2d.1} parent=31 // pred_fallthru
          _
      $region32: #{quan_conv2d.1} parent=5 // pred_fallthru
        _
      %p1597 = scmp.le.s32.totalorder 2, %s16
      // Predicated region
      $region49: #{quan_conv2d.1} parent=5 // pred_check
        %p1598 = pneg %p1597
      $region50: #{quan_conv2d.1} parent=5 // pred_check_branch
        %1600 = sbr.rel (%p1598) target = $region52
      $region51: #{quan_conv2d.1} parent=5 // pred_region
        %s1601 = ssub.s32 %s16, 2
        // Predicated region
        $region53: #{quan_conv2d.1} parent=51 // pred_check
          %p1602 = pneg %p146
        $region54: #{quan_conv2d.1} parent=51 // pred_check_branch
          %1604 = sbr.rel (%p1602) target = $region56
        $region55: #{quan_conv2d.1} parent=51 // pred_region
          %s1605 = sand.u32 %s131, 1
          %s1606 = scalar_lea.sflag [#allocation4], %s1605
          %s1607 = sand.u32 %s131, 1
          %s1608 = smul.addr %s1607, 256
          %s1609 = scalar_lea.vmem [#allocation8], %s1608
          %1610 = dma.done %s1606, 4096
        $region56: #{quan_conv2d.1} parent=51 // pred_fallthru
          _
      $region52: #{quan_conv2d.1} parent=5 // pred_fallthru
        _
    $region6: #{quan_conv2d.1} parent=1 // loop_footer
      %s20 = sadd.s32 1, %s16
    $region7: #{quan_conv2d.1} parent=1 // loop_footer_branch
      %15 = sbr.rel target = $region3
    $region8: #{quan_conv2d.1} parent=1 // loop_exit
      _
    %1611 = vsyncpa [#allocation3], 1
    %s1612 = scalar_lea.sflag [#allocation3], 1
    %1613 = vsyncpa %s1612, 1
    %1614 = vsyncpa [#allocation6], 1
    %1615 = vsyncpa [#allocation4], 1
    %s1616 = scalar_lea.sflag [#allocation4], 1
    %1617 = vsyncpa %s1616, 1

</llo_original>
